<compile_context>
chip_gen: v7x
topology: tpu7x:2x2x1
jax: 0.10.0
libtpu: 0.0.40
codegen_flags: <defaults>
</compile_context>

<pallas_src>
import jax
import jax.numpy as jnp
from jax.experimental import pallas as pl
from jax.experimental.pallas import tpu as pltpu

LANE = 128


def _round_up(x, m):
    return ((x + m - 1) // m) * m


def _elu(v):
    # ELU(alpha=1).  exp argument clamped to <= 0 so the unselected branch
    # never overflows for large positive v.
    return jnp.where(v > 0, v, jnp.exp(jnp.minimum(v, 0.0)) - 1.0)


def _make_fused_gcn_kernel(tile_m):
    def kernel(x_ref, w1_ref, b1_ref, w2_ref, b2_ref, adj_ref, o_ref,
               s1_ref, h_ref, s2_ref):
        p = pl.program_id(0)   # phase: 0 = first conv, 1 = second conv
        i = pl.program_id(1)   # row tile index

        # ---- phase 0, first step: support1 = X @ W1 (computed once) --------
        @pl.when(jnp.logical_and(p == 0, i == 0))
        def _():
            s1_ref[...] = jnp.dot(
                x_ref[...], w1_ref[...],
                preferred_element_type=jnp.float32).astype(s1_ref.dtype)

        # ---- phase 0: H[tile i] = ELU(adj[tile i] @ support1 + b1) ---------
        @pl.when(p == 0)
        def _():
            h = jnp.dot(adj_ref[...], s1_ref[...],
                        preferred_element_type=jnp.float32) + b1_ref[...]
            row0 = pl.multiple_of(i * tile_m, tile_m)
            h_ref[pl.ds(row0, tile_m), :] = _elu(h).astype(h_ref.dtype)

        # ---- phase 1, first step: support2 = H @ W2 (H is now complete) ----
        @pl.when(jnp.logical_and(p == 1, i == 0))
        def _():
            s2_ref[...] = jnp.dot(
                h_ref[...], w2_ref[...],
                preferred_element_type=jnp.float32).astype(s2_ref.dtype)

        # ---- phase 1: out[tile i] = ELU(adj[tile i] @ support2 + b2) -------
        @pl.when(p == 1)
        def _():
            y = jnp.dot(adj_ref[...], s2_ref[...],
                        preferred_element_type=jnp.float32) + b2_ref[...]
            o_ref[...] = _elu(y).astype(o_ref.dtype)

    return kernel


def gnn_encoder_forward(x, adj, params, dropout_rate=0.5):
    """GNNEncoder.forward for layer='gcn', 2 layers, ELU activation, bn off.

    x   : (N, F_in) node features
    adj : (N, N) dense GCN-normalized adjacency (D^-1/2 (A+I) D^-1/2)
    params = (W1 (F_in,H), b1 (H,), W2 (H,F_out), b2 (F_out,))
    """
    del dropout_rate  # inference mode: nn.Dropout == identity (see TODO above)
    w1, b1, w2, b2 = params
    n, f_in = x.shape
    hidden = w1.shape[1]
    f_out = w2.shape[1]

    # ---- lane/tile-aligned padded shapes ------------------------------------
    f_in_p = _round_up(f_in, LANE)
    h_p = _round_up(hidden, LANE)
    f_out_p = _round_up(f_out, LANE)
    # 256-row tiles are MXU-friendly on v6e/v7x and a multiple of 128 for v5e;
    # tiny graphs collapse to a single 128-row tile.
    tile_m = min(256, _round_up(n, LANE))
    n_p = _round_up(n, tile_m)
    num_tiles = n_p // tile_m

    f32 = jnp.float32
    # NOTE: for large problems, casting xp/adjp/w*p (and the three scratches)
    # to bfloat16 halves HBM/VMEM traffic and doubles MXU throughput on
    # v5e/v6e/v7x; kept f32 here to preserve the tight correctness tolerance.
    xp = jnp.zeros((n_p, f_in_p), f32).at[:n, :f_in].set(x.astype(f32))
    adjp = jnp.zeros((n_p, n_p), f32).at[:n, :n].set(adj.astype(f32))
    w1p = jnp.zeros((f_in_p, h_p), f32).at[:f_in, :hidden].set(w1.astype(f32))
    b1p = jnp.zeros((1, h_p), f32).at[0, :hidden].set(b1.astype(f32))
    w2p = jnp.zeros((h_p, f_out_p), f32).at[:hidden, :f_out].set(w2.astype(f32))
    b2p = jnp.zeros((1, f_out_p), f32).at[0, :f_out].set(b2.astype(f32))

    # ---- VMEM budget: double-buffered blocks + persistent scratches ---------
    est_bytes = 4 * (
        2 * (tile_m * n_p              # adj row tile (streamed)
             + n_p * f_in_p            # X (resident)
             + f_in_p * h_p + h_p      # W1, b1
             + h_p * f_out_p + f_out_p  # W2, b2
             + tile_m * f_out_p)       # output tile
        + 2 * n_p * h_p                # support1 + H scratches
        + n_p * f_out_p)               # support2 scratch
    vmem_limit = int(min(max(2 * est_bytes, 4 << 20), 64 << 20))  # v7x cap

    resident = lambda p, i: (0, 0)
    row_tile = lambda p, i: (i, 0)

    out_p = pl.pallas_call(
        _make_fused_gcn_kernel(tile_m),
        out_shape=jax.ShapeDtypeStruct((n_p, f_out_p), f32),
        grid_spec=pltpu.PrefetchScalarGridSpec(
            num_scalar_prefetch=0,
            grid=(2, num_tiles),                      # (phase, row tile)
            in_specs=[
                pl.BlockSpec((n_p, f_in_p), resident),    # X
                pl.BlockSpec((f_in_p, h_p), resident),    # W1
                pl.BlockSpec((1, h_p), resident),         # b1
                pl.BlockSpec((h_p, f_out_p), resident),   # W2
                pl.BlockSpec((1, f_out_p), resident),     # b2
                pl.BlockSpec((tile_m, n_p), row_tile),    # adj row tiles
            ],
            out_specs=pl.BlockSpec((tile_m, f_out_p), row_tile),
            scratch_shapes=[
                pltpu.VMEM((n_p, h_p), f32),       # support1 = X @ W1
                pltpu.VMEM((n_p, h_p), f32),       # hidden H (stays in VMEM)
                pltpu.VMEM((n_p, f_out_p), f32),   # support2 = H @ W2
            ],
        ),
        compiler_params=pltpu.CompilerParams(
            # Phase 1 tiles read ALL of phase 0's H scratch -> both axes must
            # run sequentially on one core ("arbitrary").
            dimension_semantics=("arbitrary", "arbitrary"),
            vmem_limit_bytes=vmem_limit,
        ),
    )(xp, w1p, b1p, w2p, b2p, adjp)

    return out_p[:n, :f_out]


if __name__ == "__main__":
    key = jax.random.PRNGKey(0)
    k_x, k_adj, k_w1, k_b1, k_w2, k_b2 = jax.random.split(key, 6)

    n_nodes, in_ch, hidden_ch, out_ch = 12, 16, 32, 8

    # Node features.
    x = jax.random.normal(k_x, (n_nodes, in_ch), dtype=jnp.float32)

    # Dense GCN-normalized adjacency with self loops: D^-1/2 (A + I) D^-1/2
    # (what GCNConv builds internally from edge_index).
    a = (jax.random.uniform(k_adj, (n_nodes, n_nodes)) > 0.7).astype(jnp.float32)
    a = jnp.maximum(a, a.T)
    a = a * (1.0 - jnp.eye(n_nodes, dtype=jnp.float32)) + jnp.eye(n_nodes, dtype=jnp.float32)
    d_inv_sqrt = 1.0 / jnp.sqrt(jnp.sum(a, axis=1))
    adj = a * d_inv_sqrt[:, None] * d_inv_sqrt[None, :]

    def glorot(k, shape):
        lim = (6.0 / (shape[0] + shape[1])) ** 0.5
        return jax.random.uniform(k, shape, minval=-lim, maxval=lim, dtype=jnp.float32)

    params = (
        glorot(k_w1, (in_ch, hidden_ch)),
        0.1 * jax.random.normal(k_b1, (hidden_ch,), dtype=jnp.float32),
        glorot(k_w2, (hidden_ch, out_ch)),
        0.1 * jax.random.normal(k_b2, (out_ch,), dtype=jnp.float32),
    )

    out = gnn_encoder_forward(x, adj, params, dropout_rate=0.5)
    out = jax.block_until_ready(out)

    # Plain-JAX reference of the same forward (full-precision matmuls).
    w1, b1, w2, b2 = params
    hp = jax.lax.Precision.HIGHEST
    h_ref = jax.nn.elu(jnp.dot(adj, jnp.dot(x, w1, precision=hp), precision=hp) + b1)
    out_ref = jax.nn.elu(jnp.dot(adj, jnp.dot(h_ref, w2, precision=hp), precision=hp) + b2)

    assert out.shape == (n_nodes, out_ch)
    assert jnp.allclose(out, out_ref, atol=1e-3, rtol=1e-3), "mismatch vs reference"

    print("KERNEL_OK")
</pallas_src>

<mosaic_0001>
module attributes {stable_mosaic.version = 11 : i64} {
  func.func @kernel(%arg0: i32, %arg1: i32, %arg2: memref<128x128xf32, #tpu.memory_space<vmem>>, %arg3: memref<128x128xf32, #tpu.memory_space<vmem>>, %arg4: memref<1x128xf32, #tpu.memory_space<vmem>>, %arg5: memref<128x128xf32, #tpu.memory_space<vmem>>, %arg6: memref<1x128xf32, #tpu.memory_space<vmem>>, %arg7: memref<128x128xf32, #tpu.memory_space<vmem>>, %arg8: memref<128x128xf32, #tpu.memory_space<vmem>>, %arg9: memref<128x128xf32, #tpu.memory_space<vmem>>, %arg10: memref<128x128xf32, #tpu.memory_space<vmem>>, %arg11: memref<128x128xf32, #tpu.memory_space<vmem>>) attributes {dimension_semantics = [#tpu.dimension_semantics<arbitrary>, #tpu.dimension_semantics<arbitrary>], iteration_bounds = array<i64: 2, 1>, scalar_prefetch = 0 : i64, scratch_operands = 3 : i64, tpu.core_type = #tpu.core_type<tc>, window_params = [{pipeline_mode = #tpu.pipeline_mode<synchronous>, transform_indices = @transform_0, window_bounds = array<i64: 128, 128>}, {pipeline_mode = #tpu.pipeline_mode<synchronous>, transform_indices = @transform_1, window_bounds = array<i64: 128, 128>}, {pipeline_mode = #tpu.pipeline_mode<synchronous>, transform_indices = @transform_2, window_bounds = array<i64: 1, 128>}, {pipeline_mode = #tpu.pipeline_mode<synchronous>, transform_indices = @transform_3, window_bounds = array<i64: 128, 128>}, {pipeline_mode = #tpu.pipeline_mode<synchronous>, transform_indices = @transform_4, window_bounds = array<i64: 1, 128>}, {transform_indices = @transform_5, window_bounds = array<i64: 128, 128>}, {transform_indices = @transform_6, window_bounds = array<i64: 128, 128>}]} {
    %c0_i32 = arith.constant 0 : i32
    %0 = arith.cmpi eq, %arg0, %c0_i32 : i32
    %c0_i32_0 = arith.constant 0 : i32
    %1 = arith.cmpi eq, %arg1, %c0_i32_0 : i32
    %2 = arith.andi %0, %1 : i1
    %3 = arith.extui %2 : i1 to i32
    %c0_i32_1 = arith.constant 0 : i32
    %4 = arith.cmpi ne, %3, %c0_i32_1 : i32
    scf.if %4 {
      %c0 = arith.constant 0 : index
      %c0_8 = arith.constant 0 : index
      %16 = vector.load %arg2[%c0, %c0_8] : memref<128x128xf32, #tpu.memory_space<vmem>>, vector<128x128xf32>
      %c0_9 = arith.constant 0 : index
      %c0_10 = arith.constant 0 : index
      %17 = vector.load %arg3[%c0_9, %c0_10] : memref<128x128xf32, #tpu.memory_space<vmem>>, vector<128x128xf32>
      %cst = arith.constant dense<0.000000e+00> : vector<128x128xf32>
      %18 = tpu.matmul %16, %17, %cst {dimension_numbers = #tpu.dot_dimension_numbers<[1], [0], [0], [1], [0, 0, 1, 1], [], []>} : vector<128x128xf32>, vector<128x128xf32>, vector<128x128xf32> -> vector<128x128xf32>
      %c0_11 = arith.constant 0 : index
      %c0_12 = arith.constant 0 : index
      %19 = vector.load %arg9[%c0_11, %c0_12] : memref<128x128xf32, #tpu.memory_space<vmem>>, vector<128x128xf32>
      tpu.vector_store %arg9[%c0_11, %c0_12], %18 {strides = array<i32>} : memref<128x128xf32, #tpu.memory_space<vmem>>, vector<128x128xf32>,
    } else {
    }
    %c0_i32_2 = arith.constant 0 : i32
    %5 = arith.cmpi eq, %arg0, %c0_i32_2 : i32
    %6 = arith.extui %5 : i1 to i32
    %c0_i32_3 = arith.constant 0 : i32
    %7 = arith.cmpi ne, %6, %c0_i32_3 : i32
    scf.if %7 {
      %c0 = arith.constant 0 : index
      %c0_8 = arith.constant 0 : index
      %16 = vector.load %arg7[%c0, %c0_8] : memref<128x128xf32, #tpu.memory_space<vmem>>, vector<128x128xf32>
      %c0_9 = arith.constant 0 : index
      %c0_10 = arith.constant 0 : index
      %17 = vector.load %arg9[%c0_9, %c0_10] : memref<128x128xf32, #tpu.memory_space<vmem>>, vector<128x128xf32>
      %cst = arith.constant dense<0.000000e+00> : vector<128x128xf32>
      %18 = tpu.matmul %16, %17, %cst {dimension_numbers = #tpu.dot_dimension_numbers<[1], [0], [0], [1], [0, 0, 1, 1], [], []>} : vector<128x128xf32>, vector<128x128xf32>, vector<128x128xf32> -> vector<128x128xf32>
      %c0_11 = arith.constant 0 : index
      %c0_12 = arith.constant 0 : index
      %19 = vector.load %arg4[%c0_11, %c0_12] : memref<1x128xf32, #tpu.memory_space<vmem>>, vector<1x128xf32>
      %20 = vector.broadcast %19 : vector<1x128xf32> to vector<128x128xf32>
      %21 = arith.addf %18, %20 : vector<128x128xf32>
      %c128_i32 = arith.constant 128 : i32
      %22 = arith.muli %arg1, %c128_i32 : i32
      %23 = tpu.assume_multiple %22, 128 : i32
      %cst_13 = arith.constant 0.000000e+00 : f32
      %24 = vector.broadcast %cst_13 : f32 to vector<128x128xf32>
      %25 = arith.cmpf ogt, %21, %24 : vector<128x128xf32>
      %cst_14 = arith.constant 0.000000e+00 : f32
      %26 = vector.broadcast %cst_14 : f32 to vector<128x128xf32>
      %27 = arith.minimumf %21, %26 : vector<128x128xf32>
      %28 = math.exp %27 : vector<128x128xf32>
      %cst_15 = arith.constant 1.000000e+00 : f32
      %29 = vector.broadcast %cst_15 : f32 to vector<128x128xf32>
      %30 = arith.subf %28, %29 : vector<128x128xf32>
      %31 = arith.select %25, %21, %30 : vector<128x128xi1>, vector<128x128xf32>
      %32 = arith.index_cast %23 : i32 to index
      %c0_16 = arith.constant 0 : index
      %33 = vector.load %arg10[%32, %c0_16] : memref<128x128xf32, #tpu.memory_space<vmem>>, vector<128x128xf32>
      tpu.vector_store %arg10[%32, %c0_16], %31 {strides = array<i32>} : memref<128x128xf32, #tpu.memory_space<vmem>>, vector<128x128xf32>,
    } else {
    }
    %c1_i32 = arith.constant 1 : i32
    %8 = arith.cmpi eq, %arg0, %c1_i32 : i32
    %c0_i32_4 = arith.constant 0 : i32
    %9 = arith.cmpi eq, %arg1, %c0_i32_4 : i32
    %10 = arith.andi %8, %9 : i1
    %11 = arith.extui %10 : i1 to i32
    %c0_i32_5 = arith.constant 0 : i32
    %12 = arith.cmpi ne, %11, %c0_i32_5 : i32
    scf.if %12 {
      %c0 = arith.constant 0 : index
      %c0_8 = arith.constant 0 : index
      %16 = vector.load %arg10[%c0, %c0_8] : memref<128x128xf32, #tpu.memory_space<vmem>>, vector<128x128xf32>
      %c0_9 = arith.constant 0 : index
      %c0_10 = arith.constant 0 : index
      %17 = vector.load %arg5[%c0_9, %c0_10] : memref<128x128xf32, #tpu.memory_space<vmem>>, vector<128x128xf32>
      %cst = arith.constant dense<0.000000e+00> : vector<128x128xf32>
      %18 = tpu.matmul %16, %17, %cst {dimension_numbers = #tpu.dot_dimension_numbers<[1], [0], [0], [1], [0, 0, 1, 1], [], []>} : vector<128x128xf32>, vector<128x128xf32>, vector<128x128xf32> -> vector<128x128xf32>
      %c0_11 = arith.constant 0 : index
      %c0_12 = arith.constant 0 : index
      %19 = vector.load %arg11[%c0_11, %c0_12] : memref<128x128xf32, #tpu.memory_space<vmem>>, vector<128x128xf32>
      tpu.vector_store %arg11[%c0_11, %c0_12], %18 {strides = array<i32>} : memref<128x128xf32, #tpu.memory_space<vmem>>, vector<128x128xf32>,
    } else {
    }
    %c1_i32_6 = arith.constant 1 : i32
    %13 = arith.cmpi eq, %arg0, %c1_i32_6 : i32
    %14 = arith.extui %13 : i1 to i32
    %c0_i32_7 = arith.constant 0 : i32
    %15 = arith.cmpi ne, %14, %c0_i32_7 : i32
    scf.if %15 {
      %c0 = arith.constant 0 : index
      %c0_8 = arith.constant 0 : index
      %16 = vector.load %arg7[%c0, %c0_8] : memref<128x128xf32, #tpu.memory_space<vmem>>, vector<128x128xf32>
      %c0_9 = arith.constant 0 : index
      %c0_10 = arith.constant 0 : index
      %17 = vector.load %arg11[%c0_9, %c0_10] : memref<128x128xf32, #tpu.memory_space<vmem>>, vector<128x128xf32>
      %cst = arith.constant dense<0.000000e+00> : vector<128x128xf32>
      %18 = tpu.matmul %16, %17, %cst {dimension_numbers = #tpu.dot_dimension_numbers<[1], [0], [0], [1], [0, 0, 1, 1], [], []>} : vector<128x128xf32>, vector<128x128xf32>, vector<128x128xf32> -> vector<128x128xf32>
      %c0_11 = arith.constant 0 : index
      %c0_12 = arith.constant 0 : index
      %19 = vector.load %arg6[%c0_11, %c0_12] : memref<1x128xf32, #tpu.memory_space<vmem>>, vector<1x128xf32>
      %20 = vector.broadcast %19 : vector<1x128xf32> to vector<128x128xf32>
      %21 = arith.addf %18, %20 : vector<128x128xf32>
      %cst_13 = arith.constant 0.000000e+00 : f32
      %22 = vector.broadcast %cst_13 : f32 to vector<128x128xf32>
      %23 = arith.cmpf ogt, %21, %22 : vector<128x128xf32>
      %cst_14 = arith.constant 0.000000e+00 : f32
      %24 = vector.broadcast %cst_14 : f32 to vector<128x128xf32>
      %25 = arith.minimumf %21, %24 : vector<128x128xf32>
      %26 = math.exp %25 : vector<128x128xf32>
      %cst_15 = arith.constant 1.000000e+00 : f32
      %27 = vector.broadcast %cst_15 : f32 to vector<128x128xf32>
      %28 = arith.subf %26, %27 : vector<128x128xf32>
      %29 = arith.select %23, %21, %28 : vector<128x128xi1>, vector<128x128xf32>
      %c0_16 = arith.constant 0 : index
      %c0_17 = arith.constant 0 : index
      %30 = vector.load %arg8[%c0_16, %c0_17] : memref<128x128xf32, #tpu.memory_space<vmem>>, vector<128x128xf32>
      tpu.vector_store %arg8[%c0_16, %c0_17], %29 {strides = array<i32>} : memref<128x128xf32, #tpu.memory_space<vmem>>, vector<128x128xf32>,
    } else {
    }
    return
  }
  func.func @transform_0(%arg0: i32, %arg1: i32) -> (i32, i32) {
    %c0_i32 = arith.constant 0 : i32
    %c0_i32_0 = arith.constant 0 : i32
    %c0_i32_1 = arith.constant 0 : i32
    return %c0_i32, %c0_i32_0 : i32, i32
  }
  func.func @transform_1(%arg0: i32, %arg1: i32) -> (i32, i32) {
    %c0_i32 = arith.constant 0 : i32
    %c0_i32_0 = arith.constant 0 : i32
    %c0_i32_1 = arith.constant 0 : i32
    return %c0_i32, %c0_i32_0 : i32, i32
  }
  func.func @transform_2(%arg0: i32, %arg1: i32) -> (i32, i32) {
    %c0_i32 = arith.constant 0 : i32
    %c0_i32_0 = arith.constant 0 : i32
    %c0_i32_1 = arith.constant 0 : i32
    return %c0_i32, %c0_i32_0 : i32, i32
  }
  func.func @transform_3(%arg0: i32, %arg1: i32) -> (i32, i32) {
    %c0_i32 = arith.constant 0 : i32
    %c0_i32_0 = arith.constant 0 : i32
    %c0_i32_1 = arith.constant 0 : i32
    return %c0_i32, %c0_i32_0 : i32, i32
  }
  func.func @transform_4(%arg0: i32, %arg1: i32) -> (i32, i32) {
    %c0_i32 = arith.constant 0 : i32
    %c0_i32_0 = arith.constant 0 : i32
    %c0_i32_1 = arith.constant 0 : i32
    return %c0_i32, %c0_i32_0 : i32, i32
  }
  func.func @transform_5(%arg0: i32, %arg1: i32) -> (i32, i32) {
    %c0_i32 = arith.constant 0 : i32
    %c0_i32_0 = arith.constant 0 : i32
    return %arg1, %c0_i32 : i32, i32
  }
  func.func @transform_6(%arg0: i32, %arg1: i32) -> (i32, i32) {
    %c0_i32 = arith.constant 0 : i32
    %c0_i32_0 = arith.constant 0 : i32
    return %arg1, %c0_i32 : i32, i32
  }
}

</mosaic_0001>

<llo_original>
// kernel: tpu_custom_call.1
$region0: #{tpu_custom_call.1}
  #allocation0 [shape = 'u32[]', space=smem, size = 0x4, offset = 0x4, fixed_abs, tag = 'smem constant byte address 0x4 - core index']
  #allocation1 [shape = 'u32[144,128]{1,0:T(1,128)}', space=vmem, size = 0x12000, scoped, tag = 'internal scratch']
  #allocation2 [shape = 'f32[128,128]{1,0:T(8,128)}', space=vmem, size = 0x10000, scoped, tag = 'scratch operand']
  #allocation3 [shape = 'f32[128,128]{1,0:T(8,128)}', space=vmem, size = 0x10000, scoped, tag = 'scratch operand']
  #allocation4 [shape = 'f32[128,128]{1,0:T(8,128)}', space=vmem, size = 0x10000, scoped, tag = 'scratch operand']
  %s0 = inlined_call_operand.hbm [shape: f32[128,128], index: 0, kind: input, shape index: {}]
  %s1 = inlined_call_operand.hbm [shape: f32[128,128], index: 1, kind: input, shape index: {}]
  %s2 = inlined_call_operand.vmem [shape: f32[1,128], index: 2, kind: input, shape index: {}]
  %s3 = inlined_call_operand.hbm [shape: f32[128,128], index: 3, kind: input, shape index: {}]
  %s4 = inlined_call_operand.vmem [shape: f32[1,128], index: 4, kind: input, shape index: {}]
  %s5 = inlined_call_operand.hbm [shape: f32[128,128], index: 5, kind: input, shape index: {}]
  %s6 = inlined_call_operand.hbm [shape: f32[128,128], index: 6, kind: output, shape index: {}]
  %s7 = sld [smem:[#allocation0]]
  $region89: #{tpu_custom_call.1} parent=0
    _
  %s9 = ssub.s32 1, %s7
  %s10 = scalar_select 0, %s9, %s7
  $region1: #{tpu_custom_call.1} parent=0
    #allocation5 [shape = 'u8[65536]{0}', space=vmem, size = 0x10000, scoped, tag = 'input window, operand 0, single buffered']
    #allocation6 [shape = 's32[2]{0}', space=sflag, size = 0x8, scoped, tag = 'scoped memory for tpu_custom_call.1']
    #allocation7 [shape = 's32[2]{0}', space=sflag, size = 0x8, scoped, tag = 'scoped memory for tpu_custom_call.1']
    #allocation8 [shape = 'u8[65536]{0}', space=vmem, size = 0x10000, scoped, tag = 'input window, operand 1, single buffered']
    #allocation9 [shape = 's32[1]{0}', space=sflag, size = 0x4, scoped, tag = 'scoped memory for tpu_custom_call.1']
    #allocation10 [shape = 'u8[65536]{0}', space=vmem, size = 0x10000, scoped, tag = 'input window, operand 3, single buffered']
    #allocation11 [shape = 'u8[65536]{0}', space=vmem, size = 0x10000, scoped, tag = 'input window, operand 5, single buffered']
    #allocation12 [shape = 's32[1]{0}', space=sflag, size = 0x4, scoped, tag = 'scoped memory for tpu_custom_call.1']
    #allocation13 [shape = 'u8[65536]{0}', space=vmem, size = 0x10000, scoped, tag = 'output window, operand 0, single buffered']
    %11 = vsyncpa [#allocation6], 0
    %12 = vsyncpa [#allocation9], 0
    %13 = vsyncpa [#allocation12], 0
    %14 = vsyncpa [#allocation7], 0
    loop: start=0, step=1, limit=4
    $region2: #{tpu_custom_call.1} parent=1 // loop_pre_header
      _
    $region3: #{tpu_custom_call.1} parent=1 // loop_header
      %s16 = sphi 0, %s20
      %p17 = scmp.ge.s32.totalorder %s16, 4
      %s23 = sphi 0, %s35
      %s24 = sphi 0, %s31
      %s25 = sphi 0, %s23
      %s26 = sphi 0, %s24
      %s27 = sphi 0, %s25
      %s28 = sphi 0, %s26
      %s36 = sphi 0, %s36
      %s38 = sphi 0, %s36
      %s39 = sphi 0, %s38
      %s53 = sphi 0, %s39
      %s57 = sphi 0, %s57
      %s59 = sphi 0, %s57
      %s60 = sphi 0, %s59
      %s74 = sphi 0, %s60
      %s78 = sphi 0, %s78
      %s80 = sphi 0, %s78
      %s81 = sphi 0, %s80
      %s95 = sphi 0, %s81
      %s99 = sphi 0, %s99
      %s101 = sphi 0, %s99
      %s102 = sphi 0, %s101
      %s116 = sphi 0, %s102
      %s120 = sphi 0, %s120
      %s122 = sphi 0, %s120
      %s123 = sphi 0, %s122
      %s137 = sphi 0, %s123
      %s143 = sphi 0, %s145
      %s146 = sphi 0, %s143
      %s147 = sphi 0, %s146
      %s163 = sphi 0, %s147
      %s169 = sphi 0, %s171
      %s172 = sphi 0, %s169
      %s173 = sphi 0, %s172
      %s189 = sphi 0, %s173
    $region4: #{tpu_custom_call.1} parent=1 // loop_header_branch
      %19 = sbr.rel (%p17) target = $region8
    $region5: #{tpu_custom_call.1} parent=1 // loop_body
      %s21 = ssub.s32 %s16, 1
      %s22 = ssub.s32 %s16, 2
      %s29 = sadd.s32 1, %s24
      %p30 = scmp.ge.s32.totalorder %s29, 1
      %s31 = scalar_select %p30, 0, %s29
      %s32 = sadd.s32 1, %s23
      %s33 = scalar_select %p30, %s32, %s23
      %p34 = scmp.ge.s32.totalorder %s33, 2
      %s35 = scalar_select %p34, 0, %s33
      %s37 = sadd.s32 %s36, 1
      %p40 = scmp.eq.s32.totalorder %s16, 1
      %p41 = scmp.ne.s32.totalorder %s36, %s38
      %p42 = scmp.eq.s32.totalorder %s16, 0
      %p43 = por %p41, %p42
      %p44 = scmp.ne.s32.totalorder %s36, %s38
      %p45 = scmp.eq.s32.totalorder %s21, 1
      %p46 = por %p44, %p45
      %p47 = scmp.ne.s32.totalorder %s38, %s39
      %p48 = scmp.eq.s32.totalorder %s21, 0
      %p49 = por %p47, %p48
      %p50 = scmp.ne.s32.totalorder %s38, %s39
      %p51 = scmp.eq.s32.totalorder %s22, 1
      %p52 = por %p50, %p51
      %p54 = scmp.ne.s32.totalorder %s39, %s53
      %p55 = scmp.eq.s32.totalorder %s22, 0
      %p56 = por %p54, %p55
      %s58 = sadd.s32 %s57, 1
      %p61 = scmp.eq.s32.totalorder %s16, 1
      %p62 = scmp.ne.s32.totalorder %s57, %s59
      %p63 = scmp.eq.s32.totalorder %s16, 0
      %p64 = por %p62, %p63
      %p65 = scmp.ne.s32.totalorder %s57, %s59
      %p66 = scmp.eq.s32.totalorder %s21, 1
      %p67 = por %p65, %p66
      %p68 = scmp.ne.s32.totalorder %s59, %s60
      %p69 = scmp.eq.s32.totalorder %s21, 0
      %p70 = por %p68, %p69
      %p71 = scmp.ne.s32.totalorder %s59, %s60
      %p72 = scmp.eq.s32.totalorder %s22, 1
      %p73 = por %p71, %p72
      %p75 = scmp.ne.s32.totalorder %s60, %s74
      %p76 = scmp.eq.s32.totalorder %s22, 0
      %p77 = por %p75, %p76
      %s79 = sadd.s32 %s78, 1
      %p82 = scmp.eq.s32.totalorder %s16, 1
      %p83 = scmp.ne.s32.totalorder %s78, %s80
      %p84 = scmp.eq.s32.totalorder %s16, 0
      %p85 = por %p83, %p84
      %p86 = scmp.ne.s32.totalorder %s78, %s80
      %p87 = scmp.eq.s32.totalorder %s21, 1
      %p88 = por %p86, %p87
      %p89 = scmp.ne.s32.totalorder %s80, %s81
      %p90 = scmp.eq.s32.totalorder %s21, 0
      %p91 = por %p89, %p90
      %p92 = scmp.ne.s32.totalorder %s80, %s81
      %p93 = scmp.eq.s32.totalorder %s22, 1
      %p94 = por %p92, %p93
      %p96 = scmp.ne.s32.totalorder %s81, %s95
      %p97 = scmp.eq.s32.totalorder %s22, 0
      %p98 = por %p96, %p97
      %s100 = sadd.s32 %s99, 1
      %p103 = scmp.eq.s32.totalorder %s16, 1
      %p104 = scmp.ne.s32.totalorder %s99, %s101
      %p105 = scmp.eq.s32.totalorder %s16, 0
      %p106 = por %p104, %p105
      %p107 = scmp.ne.s32.totalorder %s99, %s101
      %p108 = scmp.eq.s32.totalorder %s21, 1
      %p109 = por %p107, %p108
      %p110 = scmp.ne.s32.totalorder %s101, %s102
      %p111 = scmp.eq.s32.totalorder %s21, 0
      %p112 = por %p110, %p111
      %p113 = scmp.ne.s32.totalorder %s101, %s102
      %p114 = scmp.eq.s32.totalorder %s22, 1
      %p115 = por %p113, %p114
      %p117 = scmp.ne.s32.totalorder %s102, %s116
      %p118 = scmp.eq.s32.totalorder %s22, 0
      %p119 = por %p117, %p118
      %s121 = sadd.s32 %s120, 1
      %p124 = scmp.eq.s32.totalorder %s16, 1
      %p125 = scmp.ne.s32.totalorder %s120, %s122
      %p126 = scmp.eq.s32.totalorder %s16, 0
      %p127 = por %p125, %p126
      %p128 = scmp.ne.s32.totalorder %s120, %s122
      %p129 = scmp.eq.s32.totalorder %s21, 1
      %p130 = por %p128, %p129
      %p131 = scmp.ne.s32.totalorder %s122, %s123
      %p132 = scmp.eq.s32.totalorder %s21, 0
      %p133 = por %p131, %p132
      %p134 = scmp.ne.s32.totalorder %s122, %s123
      %p135 = scmp.eq.s32.totalorder %s22, 1
      %p136 = por %p134, %p135
      %p138 = scmp.ne.s32.totalorder %s123, %s137
      %p139 = scmp.eq.s32.totalorder %s22, 0
      %p140 = por %p138, %p139
      %s141 = ssub.s32 %s24, %s31
      %p142 = scmp.eq.s32.totalorder %s141, 0
      %s144 = sadd.s32 %s143, 1
      %s145 = scalar_select %p142, %s143, %s144
      %p148 = pneg %p142
      %p149 = scmp.eq.s32.totalorder %s16, 1
      %p150 = por %p148, %p149
      %p151 = scmp.ne.s32.totalorder %s143, %s146
      %p152 = scmp.eq.s32.totalorder %s16, 0
      %p153 = por %p151, %p152
      %p154 = scmp.ne.s32.totalorder %s143, %s146
      %p155 = scmp.eq.s32.totalorder %s21, 1
      %p156 = por %p154, %p155
      %p157 = scmp.ne.s32.totalorder %s146, %s147
      %p158 = scmp.eq.s32.totalorder %s21, 0
      %p159 = por %p157, %p158
      %p160 = scmp.ne.s32.totalorder %s146, %s147
      %p161 = scmp.eq.s32.totalorder %s22, 1
      %p162 = por %p160, %p161
      %p164 = scmp.ne.s32.totalorder %s147, %s163
      %p165 = scmp.eq.s32.totalorder %s22, 0
      %p166 = por %p164, %p165
      %s167 = ssub.s32 %s24, %s31
      %p168 = scmp.eq.s32.totalorder %s167, 0
      %s170 = sadd.s32 %s169, 1
      %s171 = scalar_select %p168, %s169, %s170
      %p174 = pneg %p168
      %p175 = scmp.eq.s32.totalorder %s16, 1
      %p176 = por %p174, %p175
      %p177 = scmp.ne.s32.totalorder %s169, %s172
      %p178 = scmp.eq.s32.totalorder %s16, 0
      %p179 = por %p177, %p178
      %p180 = scmp.ne.s32.totalorder %s169, %s172
      %p181 = scmp.eq.s32.totalorder %s21, 1
      %p182 = por %p180, %p181
      %p183 = scmp.ne.s32.totalorder %s172, %s173
      %p184 = scmp.eq.s32.totalorder %s21, 0
      %p185 = por %p183, %p184
      %p186 = scmp.ne.s32.totalorder %s172, %s173
      %p187 = scmp.eq.s32.totalorder %s22, 1
      %p188 = por %p186, %p187
      %p190 = scmp.ne.s32.totalorder %s173, %s189
      %p191 = scmp.eq.s32.totalorder %s22, 0
      %p192 = por %p190, %p191
      %p193 = scmp.le.s32.totalorder 1, %s16
      %p194 = scmp.lt.s32.totalorder %s16, 3
      %p195 = pnand %p193, %p194
      %p196 = pneg %p195
      // Predicated region
      $region9: #{tpu_custom_call.1} parent=5 // pred_check
        _
      $region10: #{tpu_custom_call.1} parent=5 // pred_check_branch
        %198 = sbr.rel (%p195) target = $region12
      $region11: #{tpu_custom_call.1} parent=5 // pred_region
        %s199 = ssub.s32 %s16, 1
        // Predicated region
        $region13: #{tpu_custom_call.1} parent=11 // pred_check
          %p200 = pneg %p49
        $region14: #{tpu_custom_call.1} parent=11 // pred_check_branch
          %202 = sbr.rel (%p200) target = $region16
        $region15: #{tpu_custom_call.1} parent=11 // pred_region
          %s204 = ssub.s32 2048, 2048
          %205 = vsyncadd [#allocation6], %s204
          %s206 = sshll.u32 [#allocation5], 4
          %s207 = int_to_ptr.vmem [resolvable:$true] %s206
          %212 = dma.hbm_to_vmem [thread:$0]  %s0, 2048, %s207, [#allocation6], 128, 128, 8
        $region16: #{tpu_custom_call.1} parent=11 // pred_fallthru
          _
        // Predicated region
        $region17: #{tpu_custom_call.1} parent=11 // pred_check
          %p213 = pneg %p70
        $region18: #{tpu_custom_call.1} parent=11 // pred_check_branch
          %215 = sbr.rel (%p213) target = $region20
        $region19: #{tpu_custom_call.1} parent=11 // pred_region
          %s217 = ssub.s32 2048, 2048
          %218 = vsyncadd [#allocation9], %s217
          %s219 = sshll.u32 [#allocation8], 4
          %s220 = int_to_ptr.vmem [resolvable:$true] %s219
          %225 = dma.hbm_to_vmem [thread:$0]  %s1, 2048, %s220, [#allocation9], 128, 128, 8
        $region20: #{tpu_custom_call.1} parent=11 // pred_fallthru
          _
        // Predicated region
        $region21: #{tpu_custom_call.1} parent=11 // pred_check
          %p226 = pneg %p91
        $region22: #{tpu_custom_call.1} parent=11 // pred_check_branch
          %228 = sbr.rel (%p226) target = $region24
        $region23: #{tpu_custom_call.1} parent=11 // pred_region
          _
        $region24: #{tpu_custom_call.1} parent=11 // pred_fallthru
          _
        // Predicated region
        $region25: #{tpu_custom_call.1} parent=11 // pred_check
          %p229 = pneg %p112
        $region26: #{tpu_custom_call.1} parent=11 // pred_check_branch
          %231 = sbr.rel (%p229) target = $region28
        $region27: #{tpu_custom_call.1} parent=11 // pred_region
          %s233 = ssub.s32 2048, 2048
          %234 = vsyncadd [#allocation9], %s233
          %s235 = sshll.u32 [#allocation10], 4
          %s236 = int_to_ptr.vmem [resolvable:$true] %s235
          %241 = dma.hbm_to_vmem [thread:$0]  %s3, 2048, %s236, [#allocation9], 128, 128, 8
        $region28: #{tpu_custom_call.1} parent=11 // pred_fallthru
          _
        // Predicated region
        $region29: #{tpu_custom_call.1} parent=11 // pred_check
          %p242 = pneg %p133
        $region30: #{tpu_custom_call.1} parent=11 // pred_check_branch
          %244 = sbr.rel (%p242) target = $region32
        $region31: #{tpu_custom_call.1} parent=11 // pred_region
          _
        $region32: #{tpu_custom_call.1} parent=11 // pred_fallthru
          _
        // Predicated region
        $region33: #{tpu_custom_call.1} parent=11 // pred_check
          %p245 = pneg %p159
        $region34: #{tpu_custom_call.1} parent=11 // pred_check_branch
          %247 = sbr.rel (%p245) target = $region36
        $region35: #{tpu_custom_call.1} parent=11 // pred_region
          %s248 = smul.u32 16, %s26
          %s250 = ssub.s32 2048, 2048
          %251 = vsyncadd [#allocation12], %s250
          %s252 = smul.addr %s248, 128
          %s253 = scalar_lea.hbm %s5, %s252
          %s254 = sshll.u32 [#allocation11], 4
          %s255 = int_to_ptr.vmem [resolvable:$true] %s254
          %260 = dma.hbm_to_vmem [thread:$0]  %s253, 2048, %s255, [#allocation12], 128, 128, 8
        $region36: #{tpu_custom_call.1} parent=11 // pred_fallthru
          _
      $region12: #{tpu_custom_call.1} parent=5 // pred_fallthru
        _
      %p261 = scmp.lt.s32.totalorder %s16, 2
      // Predicated region
      $region37: #{tpu_custom_call.1} parent=5 // pred_check
        %p262 = pneg %p261
      $region38: #{tpu_custom_call.1} parent=5 // pred_check_branch
        %264 = sbr.rel (%p262) target = $region40
      $region39: #{tpu_custom_call.1} parent=5 // pred_region
        _
      $region40: #{tpu_custom_call.1} parent=5 // pred_fallthru
        _
      %p265 = scmp.le.s32.totalorder 1, %s16
      %p266 = scmp.lt.s32.totalorder %s16, 3
      %p267 = pnand %p265, %p266
      %p268 = pneg %p267
      // Predicated region
      $region41: #{tpu_custom_call.1} parent=5 // pred_check
        _
      $region42: #{tpu_custom_call.1} parent=5 // pred_check_branch
        %270 = sbr.rel (%p267) target = $region44
      $region43: #{tpu_custom_call.1} parent=5 // pred_region
        %s271 = ssub.s32 %s16, 1
        // Predicated region
        $region45: #{tpu_custom_call.1} parent=43 // pred_check
          %p272 = pneg %p49
        $region46: #{tpu_custom_call.1} parent=43 // pred_check_branch
          %274 = sbr.rel (%p272) target = $region48
        $region47: #{tpu_custom_call.1} parent=43 // pred_region
          %275 = dma.done [#allocation6], 2048
        $region48: #{tpu_custom_call.1} parent=43 // pred_fallthru
          _
        // Predicated region
        $region49: #{tpu_custom_call.1} parent=43 // pred_check
          %p276 = pneg %p70
        $region50: #{tpu_custom_call.1} parent=43 // pred_check_branch
          %278 = sbr.rel (%p276) target = $region52
        $region51: #{tpu_custom_call.1} parent=43 // pred_region
          %279 = dma.done [#allocation9], 2048
        $region52: #{tpu_custom_call.1} parent=43 // pred_fallthru
          _
        // Predicated region
        $region53: #{tpu_custom_call.1} parent=43 // pred_check
          %p280 = pneg %p112
        $region54: #{tpu_custom_call.1} parent=43 // pred_check_branch
          %282 = sbr.rel (%p280) target = $region56
        $region55: #{tpu_custom_call.1} parent=43 // pred_region
          %283 = dma.done [#allocation9], 2048
        $region56: #{tpu_custom_call.1} parent=43 // pred_fallthru
          _
        // Predicated region
        $region57: #{tpu_custom_call.1} parent=43 // pred_check
          %p284 = pneg %p159
        $region58: #{tpu_custom_call.1} parent=43 // pred_check_branch
          %286 = sbr.rel (%p284) target = $region60
        $region59: #{tpu_custom_call.1} parent=43 // pred_region
          %287 = dma.done [#allocation12], 2048
        $region60: #{tpu_custom_call.1} parent=43 // pred_fallthru
          _
        %p288 = pneg %p49
        %p289 = pneg %p46
        %p290 = pneg %p70
        %p291 = pneg %p67
        %p292 = pneg %p91
        %p293 = pneg %p88
        %p294 = pneg %p112
        %p295 = pneg %p109
        %p296 = pneg %p133
        %p297 = pneg %p130
        %p298 = pneg %p159
        %p299 = pneg %p156
        %p300 = pneg %p185
        %p301 = pneg %p182
        %s302 = smul.u32 16, %s26
        %s303 = smul.u32 16, %s26
        %p304 = scmp.eq.s32.totalorder %s25, 0
        %p305 = scmp.eq.s32.totalorder %s26, 0
        %p306 = pnand %p304, %p305
        %p307 = pneg %p306
        // Predicated region
        $region61: #{tpu_custom_call.1} parent=43 // pred_check
          _
        $region62: #{tpu_custom_call.1} parent=43 // pred_check_branch
          %309 = sbr.rel (%p306) target = $region64
        $region63: #{tpu_custom_call.1} parent=43 // pred_region
          %v310 = vld [vmem:[#allocation5] sm:$0xff]
          %v311 = vld [vmem:[#allocation5 + $0x8] sm:$0xff]
          %v312 = vld [vmem:[#allocation5 + $0x10] sm:$0xff]
          %v313 = vld [vmem:[#allocation5 + $0x18] sm:$0xff]
          %v314 = vld [vmem:[#allocation5 + $0x20] sm:$0xff]
          %v315 = vld [vmem:[#allocation5 + $0x28] sm:$0xff]
          %v316 = vld [vmem:[#allocation5 + $0x30] sm:$0xff]
          %v317 = vld [vmem:[#allocation5 + $0x38] sm:$0xff]
          %v318 = vld [vmem:[#allocation5 + $0x40] sm:$0xff]
          %v319 = vld [vmem:[#allocation5 + $0x48] sm:$0xff]
          %v320 = vld [vmem:[#allocation5 + $0x50] sm:$0xff]
          %v321 = vld [vmem:[#allocation5 + $0x58] sm:$0xff]
          %v322 = vld [vmem:[#allocation5 + $0x60] sm:$0xff]
          %v323 = vld [vmem:[#allocation5 + $0x68] sm:$0xff]
          %v324 = vld [vmem:[#allocation5 + $0x70] sm:$0xff]
          %v325 = vld [vmem:[#allocation5 + $0x78] sm:$0xff]
          %v326 = vld [vmem:[#allocation8] sm:$0xff]
          %v327 = vld [vmem:[#allocation8 + $0x8] sm:$0xff]
          %v328 = vld [vmem:[#allocation8 + $0x10] sm:$0xff]
          %v329 = vld [vmem:[#allocation8 + $0x18] sm:$0xff]
          %v330 = vld [vmem:[#allocation8 + $0x20] sm:$0xff]
          %v331 = vld [vmem:[#allocation8 + $0x28] sm:$0xff]
          %v332 = vld [vmem:[#allocation8 + $0x30] sm:$0xff]
          %v333 = vld [vmem:[#allocation8 + $0x38] sm:$0xff]
          %v334 = vld [vmem:[#allocation8 + $0x40] sm:$0xff]
          %v335 = vld [vmem:[#allocation8 + $0x48] sm:$0xff]
          %v336 = vld [vmem:[#allocation8 + $0x50] sm:$0xff]
          %v337 = vld [vmem:[#allocation8 + $0x58] sm:$0xff]
          %v338 = vld [vmem:[#allocation8 + $0x60] sm:$0xff]
          %v339 = vld [vmem:[#allocation8 + $0x68] sm:$0xff]
          %v340 = vld [vmem:[#allocation8 + $0x70] sm:$0xff]
          %v341 = vld [vmem:[#allocation8 + $0x78] sm:$0xff]
          %342 = vmatprep.subr.mxu0 0.0
          %343 = vmatpush1.msra.mxu0 %v326
          %344 = vmatprep.subr.mxu0 0.0
          %345 = vmatpush1.msra.mxu0 %v327
          %346 = vmatprep.subr.mxu0 0.0
          %347 = vmatpush1.msra.mxu0 %v328
          %348 = vmatprep.subr.mxu0 0.0
          %349 = vmatpush1.msra.mxu0 %v329
          %350 = vmatprep.subr.mxu0 0.0
          %351 = vmatpush1.msra.mxu0 %v330
          %352 = vmatprep.subr.mxu0 0.0
          %353 = vmatpush1.msra.mxu0 %v331
          %354 = vmatprep.subr.mxu0 0.0
          %355 = vmatpush1.msra.mxu0 %v332
          %356 = vmatprep.subr.mxu0 0.0
          %357 = vmatpush1.msra.mxu0 %v333
          %358 = vmatprep.subr.mxu0 0.0
          %359 = vmatpush1.msra.mxu0 %v334
          %360 = vmatprep.subr.mxu0 0.0
          %361 = vmatpush1.msra.mxu0 %v335
          %362 = vmatprep.subr.mxu0 0.0
          %363 = vmatpush1.msra.mxu0 %v336
          %364 = vmatprep.subr.mxu0 0.0
          %365 = vmatpush1.msra.mxu0 %v337
          %366 = vmatprep.subr.mxu0 0.0
          %367 = vmatpush1.msra.mxu0 %v338
          %368 = vmatprep.subr.mxu0 0.0
          %369 = vmatpush1.msra.mxu0 %v339
          %370 = vmatprep.subr.mxu0 0.0
          %371 = vmatpush1.msra.mxu0 %v340
          %372 = vmatprep.subr.mxu0 0.0
          %373 = vmatpush1.msra.mxu0 %v341
          %374 = vmatprep.subr.mxu0 0.0
          %375 = vmatpush1.msra.mxu0 0.0
          %376 = vmatprep.subr.mxu0 0.0
          %377 = vmatpush1.msra.mxu0 0.0
          %378 = vmatprep.subr.mxu0 0.0
          %379 = vmatpush1.msra.mxu0 0.0
          %380 = vmatprep.subr.mxu0 0.0
          %381 = vmatpush1.msra.mxu0 0.0
          %382 = vmatprep.subr.mxu0 0.0
          %383 = vmatpush1.msra.mxu0 0.0
          %384 = vmatprep.subr.mxu0 0.0
          %385 = vmatpush1.msra.mxu0 0.0
          %386 = vmatprep.subr.mxu0 0.0
          %387 = vmatpush1.msra.mxu0 0.0
          %388 = vmatprep.subr.mxu0 0.0
          %389 = vmatpush1.msra.mxu0 0.0
          %390 = vmatprep.subr.mxu0 0.0
          %391 = vmatpush1.msra.mxu0 0.0
          %392 = vmatprep.subr.mxu0 0.0
          %393 = vmatpush1.msra.mxu0 0.0
          %394 = vmatprep.subr.mxu0 0.0
          %395 = vmatpush1.msra.mxu0 0.0
          %396 = vmatprep.subr.mxu0 0.0
          %397 = vmatpush1.msra.mxu0 0.0
          %398 = vmatprep.subr.mxu0 0.0
          %399 = vmatpush1.msra.mxu0 0.0
          %400 = vmatprep.subr.mxu0 0.0
          %401 = vmatpush1.msra.mxu0 0.0
          %402 = vmatprep.subr.mxu0 0.0
          %403 = vmatpush1.msra.mxu0 0.0
          %404 = vmatprep.subr.mxu0 0.0
          %405 = vmatpush1.msra.mxu0 0.0
          %406 = vmatprep.mubr.f32.mxu0 0.0
          %407 = vmatmul.mubr.f32.gmra.mrb[0].mxu0 %v310
          %v408 = vpop.f32.mrb[0].mxu0
          %v409 = vadd.f32 0.0, %v408
          %v410 = vpop.f32.mrb[0].mxu0
          %411 = vmatprep.mubr.f32.mxu0 0.0
          %412 = vmatmul.mubr.f32.gmra.mrb[0].mxu0 %v311
          %v413 = vpop.f32.mrb[0].mxu0
          %v414 = vadd.f32 0.0, %v413
          %v415 = vpop.f32.mrb[0].mxu0
          %416 = vmatprep.mubr.f32.mxu0 0.0
          %417 = vmatmul.mubr.f32.gmra.mrb[0].mxu0 %v312
          %v418 = vpop.f32.mrb[0].mxu0
          %v419 = vadd.f32 0.0, %v418
          %v420 = vpop.f32.mrb[0].mxu0
          %421 = vmatprep.mubr.f32.mxu0 0.0
          %422 = vmatmul.mubr.f32.gmra.mrb[0].mxu0 %v313
          %v423 = vpop.f32.mrb[0].mxu0
          %v424 = vadd.f32 0.0, %v423
          %v425 = vpop.f32.mrb[0].mxu0
          %426 = vmatprep.mubr.f32.mxu0 0.0
          %427 = vmatmul.mubr.f32.gmra.mrb[0].mxu0 %v314
          %v428 = vpop.f32.mrb[0].mxu0
          %v429 = vadd.f32 0.0, %v428
          %v430 = vpop.f32.mrb[0].mxu0
          %431 = vmatprep.mubr.f32.mxu0 0.0
          %432 = vmatmul.mubr.f32.gmra.mrb[0].mxu0 %v315
          %v433 = vpop.f32.mrb[0].mxu0
          %v434 = vadd.f32 0.0, %v433
          %v435 = vpop.f32.mrb[0].mxu0
          %436 = vmatprep.mubr.f32.mxu0 0.0
          %437 = vmatmul.mubr.f32.gmra.mrb[0].mxu0 %v316
          %v438 = vpop.f32.mrb[0].mxu0
          %v439 = vadd.f32 0.0, %v438
          %v440 = vpop.f32.mrb[0].mxu0
          %441 = vmatprep.mubr.f32.mxu0 0.0
          %442 = vmatmul.mubr.f32.gmra.mrb[0].mxu0 %v317
          %v443 = vpop.f32.mrb[0].mxu0
          %v444 = vadd.f32 0.0, %v443
          %v445 = vpop.f32.mrb[0].mxu0
          %446 = vmatprep.mubr.f32.mxu0 0.0
          %447 = vmatmul.mubr.f32.gmra.mrb[0].mxu0 %v318
          %v448 = vpop.f32.mrb[0].mxu0
          %v449 = vadd.f32 0.0, %v448
          %v450 = vpop.f32.mrb[0].mxu0
          %451 = vmatprep.mubr.f32.mxu0 0.0
          %452 = vmatmul.mubr.f32.gmra.mrb[0].mxu0 %v319
          %v453 = vpop.f32.mrb[0].mxu0
          %v454 = vadd.f32 0.0, %v453
          %v455 = vpop.f32.mrb[0].mxu0
          %456 = vmatprep.mubr.f32.mxu0 0.0
          %457 = vmatmul.mubr.f32.gmra.mrb[0].mxu0 %v320
          %v458 = vpop.f32.mrb[0].mxu0
          %v459 = vadd.f32 0.0, %v458
          %v460 = vpop.f32.mrb[0].mxu0
          %461 = vmatprep.mubr.f32.mxu0 0.0
          %462 = vmatmul.mubr.f32.gmra.mrb[0].mxu0 %v321
          %v463 = vpop.f32.mrb[0].mxu0
          %v464 = vadd.f32 0.0, %v463
          %v465 = vpop.f32.mrb[0].mxu0
          %466 = vmatprep.mubr.f32.mxu0 0.0
          %467 = vmatmul.mubr.f32.gmra.mrb[0].mxu0 %v322
          %v468 = vpop.f32.mrb[0].mxu0
          %v469 = vadd.f32 0.0, %v468
          %v470 = vpop.f32.mrb[0].mxu0
          %471 = vmatprep.mubr.f32.mxu0 0.0
          %472 = vmatmul.mubr.f32.gmra.mrb[0].mxu0 %v323
          %v473 = vpop.f32.mrb[0].mxu0
          %v474 = vadd.f32 0.0, %v473
          %v475 = vpop.f32.mrb[0].mxu0
          %476 = vmatprep.mubr.f32.mxu0 0.0
          %477 = vmatmul.mubr.f32.gmra.mrb[0].mxu0 %v324
          %v478 = vpop.f32.mrb[0].mxu0
          %v479 = vadd.f32 0.0, %v478
          %v480 = vpop.f32.mrb[0].mxu0
          %481 = vmatprep.mubr.f32.mxu0 0.0
          %482 = vmatmul.mubr.f32.gmra.mrb[0].mxu0 %v325
          %v483 = vpop.f32.mrb[0].mxu0
          %v484 = vadd.f32 0.0, %v483
          %v485 = vpop.f32.mrb[0].mxu0
          %486 = vdwg.mxu0
          %487 = vst [vmem:[#allocation2] sm:$0xff] %v409
          %488 = vst [vmem:[#allocation2 + $0x8] sm:$0xff] %v414
          %489 = vst [vmem:[#allocation2 + $0x10] sm:$0xff] %v419
          %490 = vst [vmem:[#allocation2 + $0x18] sm:$0xff] %v424
          %491 = vst [vmem:[#allocation2 + $0x20] sm:$0xff] %v429
          %492 = vst [vmem:[#allocation2 + $0x28] sm:$0xff] %v434
          %493 = vst [vmem:[#allocation2 + $0x30] sm:$0xff] %v439
          %494 = vst [vmem:[#allocation2 + $0x38] sm:$0xff] %v444
          %495 = vst [vmem:[#allocation2 + $0x40] sm:$0xff] %v449
          %496 = vst [vmem:[#allocation2 + $0x48] sm:$0xff] %v454
          %497 = vst [vmem:[#allocation2 + $0x50] sm:$0xff] %v459
          %498 = vst [vmem:[#allocation2 + $0x58] sm:$0xff] %v464
          %499 = vst [vmem:[#allocation2 + $0x60] sm:$0xff] %v469
          %500 = vst [vmem:[#allocation2 + $0x68] sm:$0xff] %v474
          %501 = vst [vmem:[#allocation2 + $0x70] sm:$0xff] %v479
          %502 = vst [vmem:[#allocation2 + $0x78] sm:$0xff] %v484
        $region64: #{tpu_custom_call.1} parent=43 // pred_fallthru
          _
        // Predicated region
        $region65: #{tpu_custom_call.1} parent=43 // pred_check
          %p503 = pneg %p304
        $region66: #{tpu_custom_call.1} parent=43 // pred_check_branch
          %505 = sbr.rel (%p503) target = $region68
        $region67: #{tpu_custom_call.1} parent=43 // pred_region
          %v506 = vld [vmem:[#allocation11] sm:$0xff]
          %v507 = vld [vmem:[#allocation11 + $0x8] sm:$0xff]
          %v508 = vld [vmem:[#allocation11 + $0x10] sm:$0xff]
          %v509 = vld [vmem:[#allocation11 + $0x18] sm:$0xff]
          %v510 = vld [vmem:[#allocation11 + $0x20] sm:$0xff]
          %v511 = vld [vmem:[#allocation11 + $0x28] sm:$0xff]
          %v512 = vld [vmem:[#allocation11 + $0x30] sm:$0xff]
          %v513 = vld [vmem:[#allocation11 + $0x38] sm:$0xff]
          %v514 = vld [vmem:[#allocation11 + $0x40] sm:$0xff]
          %v515 = vld [vmem:[#allocation11 + $0x48] sm:$0xff]
          %v516 = vld [vmem:[#allocation11 + $0x50] sm:$0xff]
          %v517 = vld [vmem:[#allocation11 + $0x58] sm:$0xff]
          %v518 = vld [vmem:[#allocation11 + $0x60] sm:$0xff]
          %v519 = vld [vmem:[#allocation11 + $0x68] sm:$0xff]
          %v520 = vld [vmem:[#allocation11 + $0x70] sm:$0xff]
          %v521 = vld [vmem:[#allocation11 + $0x78] sm:$0xff]
          %v522 = vld [vmem:[#allocation2] sm:$0xff]
          %v523 = vld [vmem:[#allocation2 + $0x8] sm:$0xff]
          %v524 = vld [vmem:[#allocation2 + $0x10] sm:$0xff]
          %v525 = vld [vmem:[#allocation2 + $0x18] sm:$0xff]
          %v526 = vld [vmem:[#allocation2 + $0x20] sm:$0xff]
          %v527 = vld [vmem:[#allocation2 + $0x28] sm:$0xff]
          %v528 = vld [vmem:[#allocation2 + $0x30] sm:$0xff]
          %v529 = vld [vmem:[#allocation2 + $0x38] sm:$0xff]
          %v530 = vld [vmem:[#allocation2 + $0x40] sm:$0xff]
          %v531 = vld [vmem:[#allocation2 + $0x48] sm:$0xff]
          %v532 = vld [vmem:[#allocation2 + $0x50] sm:$0xff]
          %v533 = vld [vmem:[#allocation2 + $0x58] sm:$0xff]
          %v534 = vld [vmem:[#allocation2 + $0x60] sm:$0xff]
          %v535 = vld [vmem:[#allocation2 + $0x68] sm:$0xff]
          %v536 = vld [vmem:[#allocation2 + $0x70] sm:$0xff]
          %v537 = vld [vmem:[#allocation2 + $0x78] sm:$0xff]
          %v538 = vld [vmem:[%s2] sm:$0x1]
          %v540 = vlaneseq
          %v541 = vshrl.u32 %v540, 7
          %v542 = vsub.s32 0, %v541
          %v543 = vrot.slane %v538, %v542
          %545 = vmatprep.subr.mxu0 0.0
          %546 = vmatpush1.msra.mxu0 %v522
          %547 = vmatprep.subr.mxu0 0.0
          %548 = vmatpush1.msra.mxu0 %v523
          %549 = vmatprep.subr.mxu0 0.0
          %550 = vmatpush1.msra.mxu0 %v524
          %551 = vmatprep.subr.mxu0 0.0
          %552 = vmatpush1.msra.mxu0 %v525
          %553 = vmatprep.subr.mxu0 0.0
          %554 = vmatpush1.msra.mxu0 %v526
          %555 = vmatprep.subr.mxu0 0.0
          %556 = vmatpush1.msra.mxu0 %v527
          %557 = vmatprep.subr.mxu0 0.0
          %558 = vmatpush1.msra.mxu0 %v528
          %559 = vmatprep.subr.mxu0 0.0
          %560 = vmatpush1.msra.mxu0 %v529
          %561 = vmatprep.subr.mxu0 0.0
          %562 = vmatpush1.msra.mxu0 %v530
          %563 = vmatprep.subr.mxu0 0.0
          %564 = vmatpush1.msra.mxu0 %v531
          %565 = vmatprep.subr.mxu0 0.0
          %566 = vmatpush1.msra.mxu0 %v532
          %567 = vmatprep.subr.mxu0 0.0
          %568 = vmatpush1.msra.mxu0 %v533
          %569 = vmatprep.subr.mxu0 0.0
          %570 = vmatpush1.msra.mxu0 %v534
          %571 = vmatprep.subr.mxu0 0.0
          %572 = vmatpush1.msra.mxu0 %v535
          %573 = vmatprep.subr.mxu0 0.0
          %574 = vmatpush1.msra.mxu0 %v536
          %575 = vmatprep.subr.mxu0 0.0
          %576 = vmatpush1.msra.mxu0 %v537
          %577 = vmatprep.subr.mxu0 0.0
          %578 = vmatpush1.msra.mxu0 0.0
          %579 = vmatprep.subr.mxu0 0.0
          %580 = vmatpush1.msra.mxu0 0.0
          %581 = vmatprep.subr.mxu0 0.0
          %582 = vmatpush1.msra.mxu0 0.0
          %583 = vmatprep.subr.mxu0 0.0
          %584 = vmatpush1.msra.mxu0 0.0
          %585 = vmatprep.subr.mxu0 0.0
          %586 = vmatpush1.msra.mxu0 0.0
          %587 = vmatprep.subr.mxu0 0.0
          %588 = vmatpush1.msra.mxu0 0.0
          %589 = vmatprep.subr.mxu0 0.0
          %590 = vmatpush1.msra.mxu0 0.0
          %591 = vmatprep.subr.mxu0 0.0
          %592 = vmatpush1.msra.mxu0 0.0
          %593 = vmatprep.subr.mxu0 0.0
          %594 = vmatpush1.msra.mxu0 0.0
          %595 = vmatprep.subr.mxu0 0.0
          %596 = vmatpush1.msra.mxu0 0.0
          %597 = vmatprep.subr.mxu0 0.0
          %598 = vmatpush1.msra.mxu0 0.0
          %599 = vmatprep.subr.mxu0 0.0
          %600 = vmatpush1.msra.mxu0 0.0
          %601 = vmatprep.subr.mxu0 0.0
          %602 = vmatpush1.msra.mxu0 0.0
          %603 = vmatprep.subr.mxu0 0.0
          %604 = vmatpush1.msra.mxu0 0.0
          %605 = vmatprep.subr.mxu0 0.0
          %606 = vmatpush1.msra.mxu0 0.0
          %607 = vmatprep.subr.mxu0 0.0
          %608 = vmatpush1.msra.mxu0 0.0
          %609 = vmatprep.mubr.f32.mxu0 0.0
          %610 = vmatmul.mubr.f32.gmra.mrb[0].mxu0 %v506
          %v611 = vpop.f32.mrb[0].mxu0
          %v612 = vadd.f32 %v543, %v611
          %v613 = vpop.f32.mrb[0].mxu0
          %614 = vmatprep.mubr.f32.mxu0 0.0
          %615 = vmatmul.mubr.f32.gmra.mrb[0].mxu0 %v507
          %v616 = vpop.f32.mrb[0].mxu0
          %v617 = vadd.f32 %v543, %v616
          %v618 = vpop.f32.mrb[0].mxu0
          %619 = vmatprep.mubr.f32.mxu0 0.0
          %620 = vmatmul.mubr.f32.gmra.mrb[0].mxu0 %v508
          %v621 = vpop.f32.mrb[0].mxu0
          %v622 = vadd.f32 %v543, %v621
          %v623 = vpop.f32.mrb[0].mxu0
          %624 = vmatprep.mubr.f32.mxu0 0.0
          %625 = vmatmul.mubr.f32.gmra.mrb[0].mxu0 %v509
          %v626 = vpop.f32.mrb[0].mxu0
          %v627 = vadd.f32 %v543, %v626
          %v628 = vpop.f32.mrb[0].mxu0
          %629 = vmatprep.mubr.f32.mxu0 0.0
          %630 = vmatmul.mubr.f32.gmra.mrb[0].mxu0 %v510
          %v631 = vpop.f32.mrb[0].mxu0
          %v632 = vadd.f32 %v543, %v631
          %v633 = vpop.f32.mrb[0].mxu0
          %634 = vmatprep.mubr.f32.mxu0 0.0
          %635 = vmatmul.mubr.f32.gmra.mrb[0].mxu0 %v511
          %v636 = vpop.f32.mrb[0].mxu0
          %v637 = vadd.f32 %v543, %v636
          %v638 = vpop.f32.mrb[0].mxu0
          %639 = vmatprep.mubr.f32.mxu0 0.0
          %640 = vmatmul.mubr.f32.gmra.mrb[0].mxu0 %v512
          %v641 = vpop.f32.mrb[0].mxu0
          %v642 = vadd.f32 %v543, %v641
          %v643 = vpop.f32.mrb[0].mxu0
          %644 = vmatprep.mubr.f32.mxu0 0.0
          %645 = vmatmul.mubr.f32.gmra.mrb[0].mxu0 %v513
          %v646 = vpop.f32.mrb[0].mxu0
          %v647 = vadd.f32 %v543, %v646
          %v648 = vpop.f32.mrb[0].mxu0
          %649 = vmatprep.mubr.f32.mxu0 0.0
          %650 = vmatmul.mubr.f32.gmra.mrb[0].mxu0 %v514
          %v651 = vpop.f32.mrb[0].mxu0
          %v652 = vadd.f32 %v543, %v651
          %v653 = vpop.f32.mrb[0].mxu0
          %654 = vmatprep.mubr.f32.mxu0 0.0
          %655 = vmatmul.mubr.f32.gmra.mrb[0].mxu0 %v515
          %v656 = vpop.f32.mrb[0].mxu0
          %v657 = vadd.f32 %v543, %v656
          %v658 = vpop.f32.mrb[0].mxu0
          %659 = vmatprep.mubr.f32.mxu0 0.0
          %660 = vmatmul.mubr.f32.gmra.mrb[0].mxu0 %v516
          %v661 = vpop.f32.mrb[0].mxu0
          %v662 = vadd.f32 %v543, %v661
          %v663 = vpop.f32.mrb[0].mxu0
          %664 = vmatprep.mubr.f32.mxu0 0.0
          %665 = vmatmul.mubr.f32.gmra.mrb[0].mxu0 %v517
          %v666 = vpop.f32.mrb[0].mxu0
          %v667 = vadd.f32 %v543, %v666
          %v668 = vpop.f32.mrb[0].mxu0
          %669 = vmatprep.mubr.f32.mxu0 0.0
          %670 = vmatmul.mubr.f32.gmra.mrb[0].mxu0 %v518
          %v671 = vpop.f32.mrb[0].mxu0
          %v672 = vadd.f32 %v543, %v671
          %v673 = vpop.f32.mrb[0].mxu0
          %674 = vmatprep.mubr.f32.mxu0 0.0
          %675 = vmatmul.mubr.f32.gmra.mrb[0].mxu0 %v519
          %v676 = vpop.f32.mrb[0].mxu0
          %v677 = vadd.f32 %v543, %v676
          %v678 = vpop.f32.mrb[0].mxu0
          %679 = vmatprep.mubr.f32.mxu0 0.0
          %680 = vmatmul.mubr.f32.gmra.mrb[0].mxu0 %v520
          %v681 = vpop.f32.mrb[0].mxu0
          %v682 = vadd.f32 %v543, %v681
          %v683 = vpop.f32.mrb[0].mxu0
          %684 = vmatprep.mubr.f32.mxu0 0.0
          %685 = vmatmul.mubr.f32.gmra.mrb[0].mxu0 %v521
          %v686 = vpop.f32.mrb[0].mxu0
          %v687 = vadd.f32 %v543, %v686
          %v688 = vpop.f32.mrb[0].mxu0
          %689 = vdwg.mxu0
          %s690 = smul.u32 %s26, 128
          %vm691 = vcmp.gt.f32.partialorder %v612, 0.0
          %vm692 = vcmp.gt.f32.partialorder %v617, 0.0
          %vm693 = vcmp.gt.f32.partialorder %v622, 0.0
          %vm694 = vcmp.gt.f32.partialorder %v627, 0.0
          %vm695 = vcmp.gt.f32.partialorder %v632, 0.0
          %vm696 = vcmp.gt.f32.partialorder %v637, 0.0
          %vm697 = vcmp.gt.f32.partialorder %v642, 0.0
          %vm698 = vcmp.gt.f32.partialorder %v647, 0.0
          %vm699 = vcmp.gt.f32.partialorder %v652, 0.0
          %vm700 = vcmp.gt.f32.partialorder %v657, 0.0
          %vm701 = vcmp.gt.f32.partialorder %v662, 0.0
          %vm702 = vcmp.gt.f32.partialorder %v667, 0.0
          %vm703 = vcmp.gt.f32.partialorder %v672, 0.0
          %vm704 = vcmp.gt.f32.partialorder %v677, 0.0
          %vm705 = vcmp.gt.f32.partialorder %v682, 0.0
          %vm706 = vcmp.gt.f32.partialorder %v687, 0.0
          %v707 = vmin.f32 %v612, 0.0
          %v708 = vmin.f32 %v617, 0.0
          %v709 = vmin.f32 %v622, 0.0
          %v710 = vmin.f32 %v627, 0.0
          %v711 = vmin.f32 %v632, 0.0
          %v712 = vmin.f32 %v637, 0.0
          %v713 = vmin.f32 %v642, 0.0
          %v714 = vmin.f32 %v647, 0.0
          %v715 = vmin.f32 %v652, 0.0
          %v716 = vmin.f32 %v657, 0.0
          %v717 = vmin.f32 %v662, 0.0
          %v718 = vmin.f32 %v667, 0.0
          %v719 = vmin.f32 %v672, 0.0
          %v720 = vmin.f32 %v677, 0.0
          %v721 = vmin.f32 %v682, 0.0
          %v722 = vmin.f32 %v687, 0.0
          %v723 = vmul.f32 %v707, 1.442695
          %v724 = vpow.pop %v723
          %v725 = vmul.f32 %v708, 1.442695
          %v726 = vpow.pop %v725
          %v727 = vmul.f32 %v709, 1.442695
          %v728 = vpow.pop %v727
          %v729 = vmul.f32 %v710, 1.442695
          %v730 = vpow.pop %v729
          %v731 = vmul.f32 %v711, 1.442695
          %v732 = vpow.pop %v731
          %v733 = vmul.f32 %v712, 1.442695
          %v734 = vpow.pop %v733
          %v735 = vmul.f32 %v713, 1.442695
          %v736 = vpow.pop %v735
          %v737 = vmul.f32 %v714, 1.442695
          %v738 = vpow.pop %v737
          %v739 = vmul.f32 %v715, 1.442695
          %v740 = vpow.pop %v739
          %v741 = vmul.f32 %v716, 1.442695
          %v742 = vpow.pop %v741
          %v743 = vmul.f32 %v717, 1.442695
          %v744 = vpow.pop %v743
          %v745 = vmul.f32 %v718, 1.442695
          %v746 = vpow.pop %v745
          %v747 = vmul.f32 %v719, 1.442695
          %v748 = vpow.pop %v747
          %v749 = vmul.f32 %v720, 1.442695
          %v750 = vpow.pop %v749
          %v751 = vmul.f32 %v721, 1.442695
          %v752 = vpow.pop %v751
          %v753 = vmul.f32 %v722, 1.442695
          %v754 = vpow.pop %v753
          %v755 = vsub.f32 %v724, 1.0
          %v756 = vsub.f32 %v726, 1.0
          %v757 = vsub.f32 %v728, 1.0
          %v758 = vsub.f32 %v730, 1.0
          %v759 = vsub.f32 %v732, 1.0
          %v760 = vsub.f32 %v734, 1.0
          %v761 = vsub.f32 %v736, 1.0
          %v762 = vsub.f32 %v738, 1.0
          %v763 = vsub.f32 %v740, 1.0
          %v764 = vsub.f32 %v742, 1.0
          %v765 = vsub.f32 %v744, 1.0
          %v766 = vsub.f32 %v746, 1.0
          %v767 = vsub.f32 %v748, 1.0
          %v768 = vsub.f32 %v750, 1.0
          %v769 = vsub.f32 %v752, 1.0
          %v770 = vsub.f32 %v754, 1.0
          %v771 = vsel %vm691, %v612, %v755
          %v772 = vsel %vm692, %v617, %v756
          %v773 = vsel %vm693, %v622, %v757
          %v774 = vsel %vm694, %v627, %v758
          %v775 = vsel %vm695, %v632, %v759
          %v776 = vsel %vm696, %v637, %v760
          %v777 = vsel %vm697, %v642, %v761
          %v778 = vsel %vm698, %v647, %v762
          %v779 = vsel %vm699, %v652, %v763
          %v780 = vsel %vm700, %v657, %v764
          %v781 = vsel %vm701, %v662, %v765
          %v782 = vsel %vm702, %v667, %v766
          %v783 = vsel %vm703, %v672, %v767
          %v784 = vsel %vm704, %v677, %v768
          %v785 = vsel %vm705, %v682, %v769
          %v786 = vsel %vm706, %v687, %v770
          %s787 = scalar_lea.vmem [#allocation3], %s690
          %788 = vst [vmem:[%s787] sm:$0xff] %v771
          %789 = vst [vmem:[%s787 + $0x8] sm:$0xff] %v772
          %790 = vst [vmem:[%s787 + $0x10] sm:$0xff] %v773
          %791 = vst [vmem:[%s787 + $0x18] sm:$0xff] %v774
          %792 = vst [vmem:[%s787 + $0x20] sm:$0xff] %v775
          %793 = vst [vmem:[%s787 + $0x28] sm:$0xff] %v776
          %794 = vst [vmem:[%s787 + $0x30] sm:$0xff] %v777
          %795 = vst [vmem:[%s787 + $0x38] sm:$0xff] %v778
          %796 = vst [vmem:[%s787 + $0x40] sm:$0xff] %v779
          %797 = vst [vmem:[%s787 + $0x48] sm:$0xff] %v780
          %798 = vst [vmem:[%s787 + $0x50] sm:$0xff] %v781
          %799 = vst [vmem:[%s787 + $0x58] sm:$0xff] %v782
          %800 = vst [vmem:[%s787 + $0x60] sm:$0xff] %v783
          %801 = vst [vmem:[%s787 + $0x68] sm:$0xff] %v784
          %802 = vst [vmem:[%s787 + $0x70] sm:$0xff] %v785
          %803 = vst [vmem:[%s787 + $0x78] sm:$0xff] %v786
        $region68: #{tpu_custom_call.1} parent=43 // pred_fallthru
          _
        %p804 = scmp.eq.s32.totalorder %s25, 1
        %p805 = pnand %p804, %p305
        %p806 = pneg %p805
        // Predicated region
        $region69: #{tpu_custom_call.1} parent=43 // pred_check
          _
        $region70: #{tpu_custom_call.1} parent=43 // pred_check_branch
          %808 = sbr.rel (%p805) target = $region72
        $region71: #{tpu_custom_call.1} parent=43 // pred_region
          %v809 = vld [vmem:[#allocation3] sm:$0xff]
          %v810 = vld [vmem:[#allocation3 + $0x8] sm:$0xff]
          %v811 = vld [vmem:[#allocation3 + $0x10] sm:$0xff]
          %v812 = vld [vmem:[#allocation3 + $0x18] sm:$0xff]
          %v813 = vld [vmem:[#allocation3 + $0x20] sm:$0xff]
          %v814 = vld [vmem:[#allocation3 + $0x28] sm:$0xff]
          %v815 = vld [vmem:[#allocation3 + $0x30] sm:$0xff]
          %v816 = vld [vmem:[#allocation3 + $0x38] sm:$0xff]
          %v817 = vld [vmem:[#allocation3 + $0x40] sm:$0xff]
          %v818 = vld [vmem:[#allocation3 + $0x48] sm:$0xff]
          %v819 = vld [vmem:[#allocation3 + $0x50] sm:$0xff]
          %v820 = vld [vmem:[#allocation3 + $0x58] sm:$0xff]
          %v821 = vld [vmem:[#allocation3 + $0x60] sm:$0xff]
          %v822 = vld [vmem:[#allocation3 + $0x68] sm:$0xff]
          %v823 = vld [vmem:[#allocation3 + $0x70] sm:$0xff]
          %v824 = vld [vmem:[#allocation3 + $0x78] sm:$0xff]
          %v825 = vld [vmem:[#allocation10] sm:$0xff]
          %v826 = vld [vmem:[#allocation10 + $0x8] sm:$0xff]
          %v827 = vld [vmem:[#allocation10 + $0x10] sm:$0xff]
          %v828 = vld [vmem:[#allocation10 + $0x18] sm:$0xff]
          %v829 = vld [vmem:[#allocation10 + $0x20] sm:$0xff]
          %v830 = vld [vmem:[#allocation10 + $0x28] sm:$0xff]
          %v831 = vld [vmem:[#allocation10 + $0x30] sm:$0xff]
          %v832 = vld [vmem:[#allocation10 + $0x38] sm:$0xff]
          %v833 = vld [vmem:[#allocation10 + $0x40] sm:$0xff]
          %v834 = vld [vmem:[#allocation10 + $0x48] sm:$0xff]
          %v835 = vld [vmem:[#allocation10 + $0x50] sm:$0xff]
          %v836 = vld [vmem:[#allocation10 + $0x58] sm:$0xff]
          %v837 = vld [vmem:[#allocation10 + $0x60] sm:$0xff]
          %v838 = vld [vmem:[#allocation10 + $0x68] sm:$0xff]
          %v839 = vld [vmem:[#allocation10 + $0x70] sm:$0xff]
          %v840 = vld [vmem:[#allocation10 + $0x78] sm:$0xff]
          %841 = vmatprep.subr.mxu0 0.0
          %842 = vmatpush1.msra.mxu0 %v825
          %843 = vmatprep.subr.mxu0 0.0
          %844 = vmatpush1.msra.mxu0 %v826
          %845 = vmatprep.subr.mxu0 0.0
          %846 = vmatpush1.msra.mxu0 %v827
          %847 = vmatprep.subr.mxu0 0.0
          %848 = vmatpush1.msra.mxu0 %v828
          %849 = vmatprep.subr.mxu0 0.0
          %850 = vmatpush1.msra.mxu0 %v829
          %851 = vmatprep.subr.mxu0 0.0
          %852 = vmatpush1.msra.mxu0 %v830
          %853 = vmatprep.subr.mxu0 0.0
          %854 = vmatpush1.msra.mxu0 %v831
          %855 = vmatprep.subr.mxu0 0.0
          %856 = vmatpush1.msra.mxu0 %v832
          %857 = vmatprep.subr.mxu0 0.0
          %858 = vmatpush1.msra.mxu0 %v833
          %859 = vmatprep.subr.mxu0 0.0
          %860 = vmatpush1.msra.mxu0 %v834
          %861 = vmatprep.subr.mxu0 0.0
          %862 = vmatpush1.msra.mxu0 %v835
          %863 = vmatprep.subr.mxu0 0.0
          %864 = vmatpush1.msra.mxu0 %v836
          %865 = vmatprep.subr.mxu0 0.0
          %866 = vmatpush1.msra.mxu0 %v837
          %867 = vmatprep.subr.mxu0 0.0
          %868 = vmatpush1.msra.mxu0 %v838
          %869 = vmatprep.subr.mxu0 0.0
          %870 = vmatpush1.msra.mxu0 %v839
          %871 = vmatprep.subr.mxu0 0.0
          %872 = vmatpush1.msra.mxu0 %v840
          %873 = vmatprep.subr.mxu0 0.0
          %874 = vmatpush1.msra.mxu0 0.0
          %875 = vmatprep.subr.mxu0 0.0
          %876 = vmatpush1.msra.mxu0 0.0
          %877 = vmatprep.subr.mxu0 0.0
          %878 = vmatpush1.msra.mxu0 0.0
          %879 = vmatprep.subr.mxu0 0.0
          %880 = vmatpush1.msra.mxu0 0.0
          %881 = vmatprep.subr.mxu0 0.0
          %882 = vmatpush1.msra.mxu0 0.0
          %883 = vmatprep.subr.mxu0 0.0
          %884 = vmatpush1.msra.mxu0 0.0
          %885 = vmatprep.subr.mxu0 0.0
          %886 = vmatpush1.msra.mxu0 0.0
          %887 = vmatprep.subr.mxu0 0.0
          %888 = vmatpush1.msra.mxu0 0.0
          %889 = vmatprep.subr.mxu0 0.0
          %890 = vmatpush1.msra.mxu0 0.0
          %891 = vmatprep.subr.mxu0 0.0
          %892 = vmatpush1.msra.mxu0 0.0
          %893 = vmatprep.subr.mxu0 0.0
          %894 = vmatpush1.msra.mxu0 0.0
          %895 = vmatprep.subr.mxu0 0.0
          %896 = vmatpush1.msra.mxu0 0.0
          %897 = vmatprep.subr.mxu0 0.0
          %898 = vmatpush1.msra.mxu0 0.0
          %899 = vmatprep.subr.mxu0 0.0
          %900 = vmatpush1.msra.mxu0 0.0
          %901 = vmatprep.subr.mxu0 0.0
          %902 = vmatpush1.msra.mxu0 0.0
          %903 = vmatprep.subr.mxu0 0.0
          %904 = vmatpush1.msra.mxu0 0.0
          %905 = vmatprep.mubr.f32.mxu0 0.0
          %906 = vmatmul.mubr.f32.gmra.mrb[0].mxu0 %v809
          %v907 = vpop.f32.mrb[0].mxu0
          %v908 = vadd.f32 0.0, %v907
          %v909 = vpop.f32.mrb[0].mxu0
          %910 = vmatprep.mubr.f32.mxu0 0.0
          %911 = vmatmul.mubr.f32.gmra.mrb[0].mxu0 %v810
          %v912 = vpop.f32.mrb[0].mxu0
          %v913 = vadd.f32 0.0, %v912
          %v914 = vpop.f32.mrb[0].mxu0
          %915 = vmatprep.mubr.f32.mxu0 0.0
          %916 = vmatmul.mubr.f32.gmra.mrb[0].mxu0 %v811
          %v917 = vpop.f32.mrb[0].mxu0
          %v918 = vadd.f32 0.0, %v917
          %v919 = vpop.f32.mrb[0].mxu0
          %920 = vmatprep.mubr.f32.mxu0 0.0
          %921 = vmatmul.mubr.f32.gmra.mrb[0].mxu0 %v812
          %v922 = vpop.f32.mrb[0].mxu0
          %v923 = vadd.f32 0.0, %v922
          %v924 = vpop.f32.mrb[0].mxu0
          %925 = vmatprep.mubr.f32.mxu0 0.0
          %926 = vmatmul.mubr.f32.gmra.mrb[0].mxu0 %v813
          %v927 = vpop.f32.mrb[0].mxu0
          %v928 = vadd.f32 0.0, %v927
          %v929 = vpop.f32.mrb[0].mxu0
          %930 = vmatprep.mubr.f32.mxu0 0.0
          %931 = vmatmul.mubr.f32.gmra.mrb[0].mxu0 %v814
          %v932 = vpop.f32.mrb[0].mxu0
          %v933 = vadd.f32 0.0, %v932
          %v934 = vpop.f32.mrb[0].mxu0
          %935 = vmatprep.mubr.f32.mxu0 0.0
          %936 = vmatmul.mubr.f32.gmra.mrb[0].mxu0 %v815
          %v937 = vpop.f32.mrb[0].mxu0
          %v938 = vadd.f32 0.0, %v937
          %v939 = vpop.f32.mrb[0].mxu0
          %940 = vmatprep.mubr.f32.mxu0 0.0
          %941 = vmatmul.mubr.f32.gmra.mrb[0].mxu0 %v816
          %v942 = vpop.f32.mrb[0].mxu0
          %v943 = vadd.f32 0.0, %v942
          %v944 = vpop.f32.mrb[0].mxu0
          %945 = vmatprep.mubr.f32.mxu0 0.0
          %946 = vmatmul.mubr.f32.gmra.mrb[0].mxu0 %v817
          %v947 = vpop.f32.mrb[0].mxu0
          %v948 = vadd.f32 0.0, %v947
          %v949 = vpop.f32.mrb[0].mxu0
          %950 = vmatprep.mubr.f32.mxu0 0.0
          %951 = vmatmul.mubr.f32.gmra.mrb[0].mxu0 %v818
          %v952 = vpop.f32.mrb[0].mxu0
          %v953 = vadd.f32 0.0, %v952
          %v954 = vpop.f32.mrb[0].mxu0
          %955 = vmatprep.mubr.f32.mxu0 0.0
          %956 = vmatmul.mubr.f32.gmra.mrb[0].mxu0 %v819
          %v957 = vpop.f32.mrb[0].mxu0
          %v958 = vadd.f32 0.0, %v957
          %v959 = vpop.f32.mrb[0].mxu0
          %960 = vmatprep.mubr.f32.mxu0 0.0
          %961 = vmatmul.mubr.f32.gmra.mrb[0].mxu0 %v820
          %v962 = vpop.f32.mrb[0].mxu0
          %v963 = vadd.f32 0.0, %v962
          %v964 = vpop.f32.mrb[0].mxu0
          %965 = vmatprep.mubr.f32.mxu0 0.0
          %966 = vmatmul.mubr.f32.gmra.mrb[0].mxu0 %v821
          %v967 = vpop.f32.mrb[0].mxu0
          %v968 = vadd.f32 0.0, %v967
          %v969 = vpop.f32.mrb[0].mxu0
          %970 = vmatprep.mubr.f32.mxu0 0.0
          %971 = vmatmul.mubr.f32.gmra.mrb[0].mxu0 %v822
          %v972 = vpop.f32.mrb[0].mxu0
          %v973 = vadd.f32 0.0, %v972
          %v974 = vpop.f32.mrb[0].mxu0
          %975 = vmatprep.mubr.f32.mxu0 0.0
          %976 = vmatmul.mubr.f32.gmra.mrb[0].mxu0 %v823
          %v977 = vpop.f32.mrb[0].mxu0
          %v978 = vadd.f32 0.0, %v977
          %v979 = vpop.f32.mrb[0].mxu0
          %980 = vmatprep.mubr.f32.mxu0 0.0
          %981 = vmatmul.mubr.f32.gmra.mrb[0].mxu0 %v824
          %v982 = vpop.f32.mrb[0].mxu0
          %v983 = vadd.f32 0.0, %v982
          %v984 = vpop.f32.mrb[0].mxu0
          %985 = vdwg.mxu0
          %986 = vst [vmem:[#allocation4] sm:$0xff] %v908
          %987 = vst [vmem:[#allocation4 + $0x8] sm:$0xff] %v913
          %988 = vst [vmem:[#allocation4 + $0x10] sm:$0xff] %v918
          %989 = vst [vmem:[#allocation4 + $0x18] sm:$0xff] %v923
          %990 = vst [vmem:[#allocation4 + $0x20] sm:$0xff] %v928
          %991 = vst [vmem:[#allocation4 + $0x28] sm:$0xff] %v933
          %992 = vst [vmem:[#allocation4 + $0x30] sm:$0xff] %v938
          %993 = vst [vmem:[#allocation4 + $0x38] sm:$0xff] %v943
          %994 = vst [vmem:[#allocation4 + $0x40] sm:$0xff] %v948
          %995 = vst [vmem:[#allocation4 + $0x48] sm:$0xff] %v953
          %996 = vst [vmem:[#allocation4 + $0x50] sm:$0xff] %v958
          %997 = vst [vmem:[#allocation4 + $0x58] sm:$0xff] %v963
          %998 = vst [vmem:[#allocation4 + $0x60] sm:$0xff] %v968
          %999 = vst [vmem:[#allocation4 + $0x68] sm:$0xff] %v973
          %1000 = vst [vmem:[#allocation4 + $0x70] sm:$0xff] %v978
          %1001 = vst [vmem:[#allocation4 + $0x78] sm:$0xff] %v983
        $region72: #{tpu_custom_call.1} parent=43 // pred_fallthru
          _
        // Predicated region
        $region73: #{tpu_custom_call.1} parent=43 // pred_check
          %p1002 = pneg %p804
        $region74: #{tpu_custom_call.1} parent=43 // pred_check_branch
          %1004 = sbr.rel (%p1002) target = $region76
        $region75: #{tpu_custom_call.1} parent=43 // pred_region
          %v1005 = vld [vmem:[#allocation11] sm:$0xff]
          %v1006 = vld [vmem:[#allocation11 + $0x8] sm:$0xff]
          %v1007 = vld [vmem:[#allocation11 + $0x10] sm:$0xff]
          %v1008 = vld [vmem:[#allocation11 + $0x18] sm:$0xff]
          %v1009 = vld [vmem:[#allocation11 + $0x20] sm:$0xff]
          %v1010 = vld [vmem:[#allocation11 + $0x28] sm:$0xff]
          %v1011 = vld [vmem:[#allocation11 + $0x30] sm:$0xff]
          %v1012 = vld [vmem:[#allocation11 + $0x38] sm:$0xff]
          %v1013 = vld [vmem:[#allocation11 + $0x40] sm:$0xff]
          %v1014 = vld [vmem:[#allocation11 + $0x48] sm:$0xff]
          %v1015 = vld [vmem:[#allocation11 + $0x50] sm:$0xff]
          %v1016 = vld [vmem:[#allocation11 + $0x58] sm:$0xff]
          %v1017 = vld [vmem:[#allocation11 + $0x60] sm:$0xff]
          %v1018 = vld [vmem:[#allocation11 + $0x68] sm:$0xff]
          %v1019 = vld [vmem:[#allocation11 + $0x70] sm:$0xff]
          %v1020 = vld [vmem:[#allocation11 + $0x78] sm:$0xff]
          %v1021 = vld [vmem:[#allocation4] sm:$0xff]
          %v1022 = vld [vmem:[#allocation4 + $0x8] sm:$0xff]
          %v1023 = vld [vmem:[#allocation4 + $0x10] sm:$0xff]
          %v1024 = vld [vmem:[#allocation4 + $0x18] sm:$0xff]
          %v1025 = vld [vmem:[#allocation4 + $0x20] sm:$0xff]
          %v1026 = vld [vmem:[#allocation4 + $0x28] sm:$0xff]
          %v1027 = vld [vmem:[#allocation4 + $0x30] sm:$0xff]
          %v1028 = vld [vmem:[#allocation4 + $0x38] sm:$0xff]
          %v1029 = vld [vmem:[#allocation4 + $0x40] sm:$0xff]
          %v1030 = vld [vmem:[#allocation4 + $0x48] sm:$0xff]
          %v1031 = vld [vmem:[#allocation4 + $0x50] sm:$0xff]
          %v1032 = vld [vmem:[#allocation4 + $0x58] sm:$0xff]
          %v1033 = vld [vmem:[#allocation4 + $0x60] sm:$0xff]
          %v1034 = vld [vmem:[#allocation4 + $0x68] sm:$0xff]
          %v1035 = vld [vmem:[#allocation4 + $0x70] sm:$0xff]
          %v1036 = vld [vmem:[#allocation4 + $0x78] sm:$0xff]
          %v1037 = vld [vmem:[%s4] sm:$0x1]
          %v1039 = vlaneseq
          %v1040 = vshrl.u32 %v1039, 7
          %v1041 = vsub.s32 0, %v1040
          %v1042 = vrot.slane %v1037, %v1041
          %1044 = vmatprep.subr.mxu0 0.0
          %1045 = vmatpush1.msra.mxu0 %v1021
          %1046 = vmatprep.subr.mxu0 0.0
          %1047 = vmatpush1.msra.mxu0 %v1022
          %1048 = vmatprep.subr.mxu0 0.0
          %1049 = vmatpush1.msra.mxu0 %v1023
          %1050 = vmatprep.subr.mxu0 0.0
          %1051 = vmatpush1.msra.mxu0 %v1024
          %1052 = vmatprep.subr.mxu0 0.0
          %1053 = vmatpush1.msra.mxu0 %v1025
          %1054 = vmatprep.subr.mxu0 0.0
          %1055 = vmatpush1.msra.mxu0 %v1026
          %1056 = vmatprep.subr.mxu0 0.0
          %1057 = vmatpush1.msra.mxu0 %v1027
          %1058 = vmatprep.subr.mxu0 0.0
          %1059 = vmatpush1.msra.mxu0 %v1028
          %1060 = vmatprep.subr.mxu0 0.0
          %1061 = vmatpush1.msra.mxu0 %v1029
          %1062 = vmatprep.subr.mxu0 0.0
          %1063 = vmatpush1.msra.mxu0 %v1030
          %1064 = vmatprep.subr.mxu0 0.0
          %1065 = vmatpush1.msra.mxu0 %v1031
          %1066 = vmatprep.subr.mxu0 0.0
          %1067 = vmatpush1.msra.mxu0 %v1032
          %1068 = vmatprep.subr.mxu0 0.0
          %1069 = vmatpush1.msra.mxu0 %v1033
          %1070 = vmatprep.subr.mxu0 0.0
          %1071 = vmatpush1.msra.mxu0 %v1034
          %1072 = vmatprep.subr.mxu0 0.0
          %1073 = vmatpush1.msra.mxu0 %v1035
          %1074 = vmatprep.subr.mxu0 0.0
          %1075 = vmatpush1.msra.mxu0 %v1036
          %1076 = vmatprep.subr.mxu0 0.0
          %1077 = vmatpush1.msra.mxu0 0.0
          %1078 = vmatprep.subr.mxu0 0.0
          %1079 = vmatpush1.msra.mxu0 0.0
          %1080 = vmatprep.subr.mxu0 0.0
          %1081 = vmatpush1.msra.mxu0 0.0
          %1082 = vmatprep.subr.mxu0 0.0
          %1083 = vmatpush1.msra.mxu0 0.0
          %1084 = vmatprep.subr.mxu0 0.0
          %1085 = vmatpush1.msra.mxu0 0.0
          %1086 = vmatprep.subr.mxu0 0.0
          %1087 = vmatpush1.msra.mxu0 0.0
          %1088 = vmatprep.subr.mxu0 0.0
          %1089 = vmatpush1.msra.mxu0 0.0
          %1090 = vmatprep.subr.mxu0 0.0
          %1091 = vmatpush1.msra.mxu0 0.0
          %1092 = vmatprep.subr.mxu0 0.0
          %1093 = vmatpush1.msra.mxu0 0.0
          %1094 = vmatprep.subr.mxu0 0.0
          %1095 = vmatpush1.msra.mxu0 0.0
          %1096 = vmatprep.subr.mxu0 0.0
          %1097 = vmatpush1.msra.mxu0 0.0
          %1098 = vmatprep.subr.mxu0 0.0
          %1099 = vmatpush1.msra.mxu0 0.0
          %1100 = vmatprep.subr.mxu0 0.0
          %1101 = vmatpush1.msra.mxu0 0.0
          %1102 = vmatprep.subr.mxu0 0.0
          %1103 = vmatpush1.msra.mxu0 0.0
          %1104 = vmatprep.subr.mxu0 0.0
          %1105 = vmatpush1.msra.mxu0 0.0
          %1106 = vmatprep.subr.mxu0 0.0
          %1107 = vmatpush1.msra.mxu0 0.0
          %1108 = vmatprep.mubr.f32.mxu0 0.0
          %1109 = vmatmul.mubr.f32.gmra.mrb[0].mxu0 %v1005
          %v1110 = vpop.f32.mrb[0].mxu0
          %v1111 = vadd.f32 %v1042, %v1110
          %v1112 = vpop.f32.mrb[0].mxu0
          %1113 = vmatprep.mubr.f32.mxu0 0.0
          %1114 = vmatmul.mubr.f32.gmra.mrb[0].mxu0 %v1006
          %v1115 = vpop.f32.mrb[0].mxu0
          %v1116 = vadd.f32 %v1042, %v1115
          %v1117 = vpop.f32.mrb[0].mxu0
          %1118 = vmatprep.mubr.f32.mxu0 0.0
          %1119 = vmatmul.mubr.f32.gmra.mrb[0].mxu0 %v1007
          %v1120 = vpop.f32.mrb[0].mxu0
          %v1121 = vadd.f32 %v1042, %v1120
          %v1122 = vpop.f32.mrb[0].mxu0
          %1123 = vmatprep.mubr.f32.mxu0 0.0
          %1124 = vmatmul.mubr.f32.gmra.mrb[0].mxu0 %v1008
          %v1125 = vpop.f32.mrb[0].mxu0
          %v1126 = vadd.f32 %v1042, %v1125
          %v1127 = vpop.f32.mrb[0].mxu0
          %1128 = vmatprep.mubr.f32.mxu0 0.0
          %1129 = vmatmul.mubr.f32.gmra.mrb[0].mxu0 %v1009
          %v1130 = vpop.f32.mrb[0].mxu0
          %v1131 = vadd.f32 %v1042, %v1130
          %v1132 = vpop.f32.mrb[0].mxu0
          %1133 = vmatprep.mubr.f32.mxu0 0.0
          %1134 = vmatmul.mubr.f32.gmra.mrb[0].mxu0 %v1010
          %v1135 = vpop.f32.mrb[0].mxu0
          %v1136 = vadd.f32 %v1042, %v1135
          %v1137 = vpop.f32.mrb[0].mxu0
          %1138 = vmatprep.mubr.f32.mxu0 0.0
          %1139 = vmatmul.mubr.f32.gmra.mrb[0].mxu0 %v1011
          %v1140 = vpop.f32.mrb[0].mxu0
          %v1141 = vadd.f32 %v1042, %v1140
          %v1142 = vpop.f32.mrb[0].mxu0
          %1143 = vmatprep.mubr.f32.mxu0 0.0
          %1144 = vmatmul.mubr.f32.gmra.mrb[0].mxu0 %v1012
          %v1145 = vpop.f32.mrb[0].mxu0
          %v1146 = vadd.f32 %v1042, %v1145
          %v1147 = vpop.f32.mrb[0].mxu0
          %1148 = vmatprep.mubr.f32.mxu0 0.0
          %1149 = vmatmul.mubr.f32.gmra.mrb[0].mxu0 %v1013
          %v1150 = vpop.f32.mrb[0].mxu0
          %v1151 = vadd.f32 %v1042, %v1150
          %v1152 = vpop.f32.mrb[0].mxu0
          %1153 = vmatprep.mubr.f32.mxu0 0.0
          %1154 = vmatmul.mubr.f32.gmra.mrb[0].mxu0 %v1014
          %v1155 = vpop.f32.mrb[0].mxu0
          %v1156 = vadd.f32 %v1042, %v1155
          %v1157 = vpop.f32.mrb[0].mxu0
          %1158 = vmatprep.mubr.f32.mxu0 0.0
          %1159 = vmatmul.mubr.f32.gmra.mrb[0].mxu0 %v1015
          %v1160 = vpop.f32.mrb[0].mxu0
          %v1161 = vadd.f32 %v1042, %v1160
          %v1162 = vpop.f32.mrb[0].mxu0
          %1163 = vmatprep.mubr.f32.mxu0 0.0
          %1164 = vmatmul.mubr.f32.gmra.mrb[0].mxu0 %v1016
          %v1165 = vpop.f32.mrb[0].mxu0
          %v1166 = vadd.f32 %v1042, %v1165
          %v1167 = vpop.f32.mrb[0].mxu0
          %1168 = vmatprep.mubr.f32.mxu0 0.0
          %1169 = vmatmul.mubr.f32.gmra.mrb[0].mxu0 %v1017
          %v1170 = vpop.f32.mrb[0].mxu0
          %v1171 = vadd.f32 %v1042, %v1170
          %v1172 = vpop.f32.mrb[0].mxu0
          %1173 = vmatprep.mubr.f32.mxu0 0.0
          %1174 = vmatmul.mubr.f32.gmra.mrb[0].mxu0 %v1018
          %v1175 = vpop.f32.mrb[0].mxu0
          %v1176 = vadd.f32 %v1042, %v1175
          %v1177 = vpop.f32.mrb[0].mxu0
          %1178 = vmatprep.mubr.f32.mxu0 0.0
          %1179 = vmatmul.mubr.f32.gmra.mrb[0].mxu0 %v1019
          %v1180 = vpop.f32.mrb[0].mxu0
          %v1181 = vadd.f32 %v1042, %v1180
          %v1182 = vpop.f32.mrb[0].mxu0
          %1183 = vmatprep.mubr.f32.mxu0 0.0
          %1184 = vmatmul.mubr.f32.gmra.mrb[0].mxu0 %v1020
          %v1185 = vpop.f32.mrb[0].mxu0
          %v1186 = vadd.f32 %v1042, %v1185
          %v1187 = vpop.f32.mrb[0].mxu0
          %1188 = vdwg.mxu0
          %vm1189 = vcmp.gt.f32.partialorder %v1111, 0.0
          %vm1190 = vcmp.gt.f32.partialorder %v1116, 0.0
          %vm1191 = vcmp.gt.f32.partialorder %v1121, 0.0
          %vm1192 = vcmp.gt.f32.partialorder %v1126, 0.0
          %vm1193 = vcmp.gt.f32.partialorder %v1131, 0.0
          %vm1194 = vcmp.gt.f32.partialorder %v1136, 0.0
          %vm1195 = vcmp.gt.f32.partialorder %v1141, 0.0
          %vm1196 = vcmp.gt.f32.partialorder %v1146, 0.0
          %vm1197 = vcmp.gt.f32.partialorder %v1151, 0.0
          %vm1198 = vcmp.gt.f32.partialorder %v1156, 0.0
          %vm1199 = vcmp.gt.f32.partialorder %v1161, 0.0
          %vm1200 = vcmp.gt.f32.partialorder %v1166, 0.0
          %vm1201 = vcmp.gt.f32.partialorder %v1171, 0.0
          %vm1202 = vcmp.gt.f32.partialorder %v1176, 0.0
          %vm1203 = vcmp.gt.f32.partialorder %v1181, 0.0
          %vm1204 = vcmp.gt.f32.partialorder %v1186, 0.0
          %v1205 = vmin.f32 %v1111, 0.0
          %v1206 = vmin.f32 %v1116, 0.0
          %v1207 = vmin.f32 %v1121, 0.0
          %v1208 = vmin.f32 %v1126, 0.0
          %v1209 = vmin.f32 %v1131, 0.0
          %v1210 = vmin.f32 %v1136, 0.0
          %v1211 = vmin.f32 %v1141, 0.0
          %v1212 = vmin.f32 %v1146, 0.0
          %v1213 = vmin.f32 %v1151, 0.0
          %v1214 = vmin.f32 %v1156, 0.0
          %v1215 = vmin.f32 %v1161, 0.0
          %v1216 = vmin.f32 %v1166, 0.0
          %v1217 = vmin.f32 %v1171, 0.0
          %v1218 = vmin.f32 %v1176, 0.0
          %v1219 = vmin.f32 %v1181, 0.0
          %v1220 = vmin.f32 %v1186, 0.0
          %v1221 = vmul.f32 %v1205, 1.442695
          %v1222 = vpow.pop %v1221
          %v1223 = vmul.f32 %v1206, 1.442695
          %v1224 = vpow.pop %v1223
          %v1225 = vmul.f32 %v1207, 1.442695
          %v1226 = vpow.pop %v1225
          %v1227 = vmul.f32 %v1208, 1.442695
          %v1228 = vpow.pop %v1227
          %v1229 = vmul.f32 %v1209, 1.442695
          %v1230 = vpow.pop %v1229
          %v1231 = vmul.f32 %v1210, 1.442695
          %v1232 = vpow.pop %v1231
          %v1233 = vmul.f32 %v1211, 1.442695
          %v1234 = vpow.pop %v1233
          %v1235 = vmul.f32 %v1212, 1.442695
          %v1236 = vpow.pop %v1235
          %v1237 = vmul.f32 %v1213, 1.442695
          %v1238 = vpow.pop %v1237
          %v1239 = vmul.f32 %v1214, 1.442695
          %v1240 = vpow.pop %v1239
          %v1241 = vmul.f32 %v1215, 1.442695
          %v1242 = vpow.pop %v1241
          %v1243 = vmul.f32 %v1216, 1.442695
          %v1244 = vpow.pop %v1243
          %v1245 = vmul.f32 %v1217, 1.442695
          %v1246 = vpow.pop %v1245
          %v1247 = vmul.f32 %v1218, 1.442695
          %v1248 = vpow.pop %v1247
          %v1249 = vmul.f32 %v1219, 1.442695
          %v1250 = vpow.pop %v1249
          %v1251 = vmul.f32 %v1220, 1.442695
          %v1252 = vpow.pop %v1251
          %v1253 = vsub.f32 %v1222, 1.0
          %v1254 = vsub.f32 %v1224, 1.0
          %v1255 = vsub.f32 %v1226, 1.0
          %v1256 = vsub.f32 %v1228, 1.0
          %v1257 = vsub.f32 %v1230, 1.0
          %v1258 = vsub.f32 %v1232, 1.0
          %v1259 = vsub.f32 %v1234, 1.0
          %v1260 = vsub.f32 %v1236, 1.0
          %v1261 = vsub.f32 %v1238, 1.0
          %v1262 = vsub.f32 %v1240, 1.0
          %v1263 = vsub.f32 %v1242, 1.0
          %v1264 = vsub.f32 %v1244, 1.0
          %v1265 = vsub.f32 %v1246, 1.0
          %v1266 = vsub.f32 %v1248, 1.0
          %v1267 = vsub.f32 %v1250, 1.0
          %v1268 = vsub.f32 %v1252, 1.0
          %v1269 = vsel %vm1189, %v1111, %v1253
          %v1270 = vsel %vm1190, %v1116, %v1254
          %v1271 = vsel %vm1191, %v1121, %v1255
          %v1272 = vsel %vm1192, %v1126, %v1256
          %v1273 = vsel %vm1193, %v1131, %v1257
          %v1274 = vsel %vm1194, %v1136, %v1258
          %v1275 = vsel %vm1195, %v1141, %v1259
          %v1276 = vsel %vm1196, %v1146, %v1260
          %v1277 = vsel %vm1197, %v1151, %v1261
          %v1278 = vsel %vm1198, %v1156, %v1262
          %v1279 = vsel %vm1199, %v1161, %v1263
          %v1280 = vsel %vm1200, %v1166, %v1264
          %v1281 = vsel %vm1201, %v1171, %v1265
          %v1282 = vsel %vm1202, %v1176, %v1266
          %v1283 = vsel %vm1203, %v1181, %v1267
          %v1284 = vsel %vm1204, %v1186, %v1268
          %1285 = vst [vmem:[#allocation13] sm:$0xff] %v1269
          %1286 = vst [vmem:[#allocation13 + $0x8] sm:$0xff] %v1270
          %1287 = vst [vmem:[#allocation13 + $0x10] sm:$0xff] %v1271
          %1288 = vst [vmem:[#allocation13 + $0x18] sm:$0xff] %v1272
          %1289 = vst [vmem:[#allocation13 + $0x20] sm:$0xff] %v1273
          %1290 = vst [vmem:[#allocation13 + $0x28] sm:$0xff] %v1274
          %1291 = vst [vmem:[#allocation13 + $0x30] sm:$0xff] %v1275
          %1292 = vst [vmem:[#allocation13 + $0x38] sm:$0xff] %v1276
          %1293 = vst [vmem:[#allocation13 + $0x40] sm:$0xff] %v1277
          %1294 = vst [vmem:[#allocation13 + $0x48] sm:$0xff] %v1278
          %1295 = vst [vmem:[#allocation13 + $0x50] sm:$0xff] %v1279
          %1296 = vst [vmem:[#allocation13 + $0x58] sm:$0xff] %v1280
          %1297 = vst [vmem:[#allocation13 + $0x60] sm:$0xff] %v1281
          %1298 = vst [vmem:[#allocation13 + $0x68] sm:$0xff] %v1282
          %1299 = vst [vmem:[#allocation13 + $0x70] sm:$0xff] %v1283
          %1300 = vst [vmem:[#allocation13 + $0x78] sm:$0xff] %v1284
        $region76: #{tpu_custom_call.1} parent=43 // pred_fallthru
          _
        // Predicated region
        $region77: #{tpu_custom_call.1} parent=43 // pred_check
          %p1301 = pneg %p182
        $region78: #{tpu_custom_call.1} parent=43 // pred_check_branch
          %1303 = sbr.rel (%p1301) target = $region80
        $region79: #{tpu_custom_call.1} parent=43 // pred_region
          %s1304 = smul.u32 16, %s26
          %s1306 = ssub.s32 2048, 2048
          %1307 = vsyncadd [#allocation7], %s1306
          %s1308 = smul.addr %s1304, 128
          %s1309 = scalar_lea.hbm %s6, %s1308
          %s1310 = sshll.u32 [#allocation13], 4
          %s1311 = int_to_ptr.vmem [resolvable:$true] %s1310
          %1316 = dma.vmem_to_hbm [thread:$0]  %s1311, 2048, %s1309, [#allocation7], 128, 128, 8
        $region80: #{tpu_custom_call.1} parent=43 // pred_fallthru
          _
        // Predicated region
        $region81: #{tpu_custom_call.1} parent=43 // pred_check
          %p1317 = pneg %p182
        $region82: #{tpu_custom_call.1} parent=43 // pred_check_branch
          %1319 = sbr.rel (%p1317) target = $region84
        $region83: #{tpu_custom_call.1} parent=43 // pred_region
          %1320 = dma.done [#allocation7], 2048
        $region84: #{tpu_custom_call.1} parent=43 // pred_fallthru
          _
      $region44: #{tpu_custom_call.1} parent=5 // pred_fallthru
        _
      %p1321 = scmp.le.s32.totalorder 2, %s16
      // Predicated region
      $region85: #{tpu_custom_call.1} parent=5 // pred_check
        %p1322 = pneg %p1321
      $region86: #{tpu_custom_call.1} parent=5 // pred_check_branch
        %1324 = sbr.rel (%p1322) target = $region88
      $region87: #{tpu_custom_call.1} parent=5 // pred_region
        %s1325 = ssub.s32 %s16, 2
      $region88: #{tpu_custom_call.1} parent=5 // pred_fallthru
        _
    $region6: #{tpu_custom_call.1} parent=1 // loop_footer
      %s20 = sadd.s32 1, %s16
    $region7: #{tpu_custom_call.1} parent=1 // loop_footer_branch
      %15 = sbr.rel target = $region3
    $region8: #{tpu_custom_call.1} parent=1 // loop_exit
      _
    %1326 = vsyncpa [#allocation6], 1
    %s1327 = scalar_lea.sflag [#allocation6], 1
    %1328 = vsyncpa %s1327, 1
    %1329 = vsyncpa [#allocation9], 1
    %1330 = vsyncpa [#allocation12], 1
    %1331 = vsyncpa [#allocation7], 1
    %s1332 = scalar_lea.sflag [#allocation7], 1
    %1333 = vsyncpa %s1332, 1

</llo_original>
